<compile_context>
chip_gen: v6e
topology: v6e:2x2x1
jax: 0.10.0
libtpu: 0.0.40
codegen_flags: <defaults>
</compile_context>

<pallas_src>
import jax
import jax.numpy as jnp
from jax import lax
from jax.experimental import pallas as pl
from jax.experimental.pallas import tpu as pltpu

F_PAD = 128     # fused / padded conv-filter (lane) width
C_PAD = 128     # padded num_classes (lane-dense output store)


def textcnn_kernel(tok_ref,     # SMEM  (B_pad*L,) int32        [scalar prefetch]
                   tab_ref,     # VMEM  (V, E) f32              [resident table]
                   w_ref,       # VMEM  (kmax*E, F_PAD) bf16    [tap-folded conv W]
                   b_ref,       # VMEM  (1, F_PAD) f32
                   mask_ref,    # VMEM  (L, F_PAD) f32          [position validity]
                   fcw_ref,     # VMEM  (F_PAD, C_PAD) bf16
                   fcb_ref,     # VMEM  (1, C_PAD) f32
                   out_ref,     # VMEM  (TB, C_PAD) f32
                   emb_vmem):   # VMEM scratch (TB*L + kmax - 1, E) f32
    V, E = tab_ref.shape
    TB = out_ref.shape[0]
    L = mask_ref.shape[0]
    TBL = TB * L
    kmax = w_ref.shape[0] // E
    rows = emb_vmem.shape[0]
    base = pl.program_id(0) * TBL

    # ---- keep the (kmax-1)-row spill tail finite (cheap, multi-core safe) ---
    if rows > TBL:
        emb_vmem[pl.ds(TBL, rows - TBL), :] = jnp.zeros((rows - TBL, E),
                                                        jnp.float32)

    # ---- Embedding gather: dynamic-index row copies from the VMEM table -----
    def gather_row(r):
        tok = jnp.clip(tok_ref[base + r], 0, V - 1)   # clamp like jnp.take
        emb_vmem[pl.ds(r, 1), :] = tab_ref[pl.ds(tok, 1), :]

    if TBL <= 256:                       # unrolled: full scheduler visibility
        for r in range(TBL):
            gather_row(r)
    else:                                # avoid code blow-up at large tiles
        def body(r, carry):
            gather_row(r)
            return carry
        lax.fori_loop(0, TBL, body, 0)

    # ---- im2col window from kmax shifted slices, ONE K=kmax*E matmul --------
    win = jnp.concatenate(
        [emb_vmem[pl.ds(j, TBL), :] for j in range(kmax)], axis=-1
    ).astype(jnp.bfloat16)                                      # (TBL, kmax*E)
    conv = jnp.dot(win, w_ref[...],
                   preferred_element_type=jnp.float32)          # (TBL, F_PAD)

    # bias + ReLU; mask zeroes positions invalid for a branch's kernel size
    # (and cross-sequence spill rows).  ReLU >= 0 keeps the max-pool exact.
    y = jnp.maximum(conv + b_ref[...], 0.0)                     # (TBL, F_PAD)
    y = y.reshape(TB, L, F_PAD) * mask_ref[...]                 # (TB, L, F_PAD)
    pooled = jnp.max(y, axis=1)                                 # (TB, F_PAD)

    # ---- Final linear layer (padded to 128 output lanes) --------------------
    logits = jnp.dot(pooled.astype(jnp.bfloat16), fcw_ref[...],
                     preferred_element_type=jnp.float32) + fcb_ref[...]
    out_ref[...] = logits                                       # (TB, C_PAD)


def pack_params(params, kernel_sizes, seq_len):
    """Fold per-branch conv weights + FC into lane-dense, zero-padded tensors."""
    E = params["emb"].shape[1]
    F = params["w"][0].shape[0]
    C = params["fc_b"].shape[-1]
    nb = len(kernel_sizes)
    kmax = max(kernel_sizes)
    assert nb * F <= F_PAD and C <= C_PAD and seq_len >= kmax

    # Tap-folded conv weight: row j*E + c, col bi*F + f  == W_torch[f, c, j]
    w_fused = jnp.zeros((kmax * E, F_PAD), jnp.float32)
    b_fused = jnp.zeros((1, F_PAD), jnp.float32)
    mask = jnp.zeros((seq_len, F_PAD), jnp.float32)
    for bi, (k, w, b) in enumerate(zip(kernel_sizes, params["w"], params["b"])):
        # flat weight: w[f, j*E + c] == W_torch[f, c, j]  ->  (k*E, F)
        w_ke_f = jnp.transpose(w.reshape(F, k, E), (1, 2, 0)).reshape(k * E, F)
        w_fused = w_fused.at[:k * E, bi * F:(bi + 1) * F].set(w_ke_f)
        b_fused = b_fused.at[0, bi * F:(bi + 1) * F].set(b.reshape(F))
        mask = mask.at[:seq_len - k + 1, bi * F:(bi + 1) * F].set(1.0)

    fc_w = jnp.zeros((F_PAD, C_PAD), jnp.float32)
    fc_w = fc_w.at[:nb * F, :C].set(params["fc_w"].T)
    fc_b = jnp.zeros((1, C_PAD), jnp.float32)
    fc_b = fc_b.at[0, :C].set(params["fc_b"].reshape(C))
    return {
        "emb": params["emb"].astype(jnp.float32),   # VMEM-resident table
        "w_fused": w_fused.astype(jnp.bfloat16),
        "b_fused": b_fused,
        "mask": mask,
        "fc_w": fc_w.astype(jnp.bfloat16),
        "fc_b": fc_b,
        "kmax": kmax,
        "num_classes": C,
        "seq_len": seq_len,
    }


def textcnn_forward(tokens, packed, *, tile_batch=None):
    B, L = tokens.shape
    assert L == packed["seq_len"]
    V, E = packed["emb"].shape
    kmax = packed["kmax"]

    if tile_batch is None:
        tile_batch = min(128, ((B + 7) // 8) * 8)   # sublane-dense output tile
    TB = int(tile_batch)
    B_pad = ((B + TB - 1) // TB) * TB
    TBL = TB * L
    rows_scratch = TBL + kmax - 1                   # + spill tail (zeroed)

    # 1-D int32 token ids -> SMEM scalar prefetch (no 2-D SMEM padding blow-up)
    tok_flat = jnp.zeros((B_pad * L,), jnp.int32)
    tok_flat = tok_flat.at[:B * L].set(tokens.reshape(-1).astype(jnp.int32))

    grid_spec = pltpu.PrefetchScalarGridSpec(
        num_scalar_prefetch=1,                      # token ids -> SMEM
        grid=(B_pad // TB,),
        in_specs=[
            pl.BlockSpec((V, E), lambda b, tok: (0, 0)),            # emb table
            pl.BlockSpec((kmax * E, F_PAD), lambda b, tok: (0, 0)), # conv W
            pl.BlockSpec((1, F_PAD), lambda b, tok: (0, 0)),        # conv b
            pl.BlockSpec((L, F_PAD), lambda b, tok: (0, 0)),        # mask
            pl.BlockSpec((F_PAD, C_PAD), lambda b, tok: (0, 0)),    # fc W
            pl.BlockSpec((1, C_PAD), lambda b, tok: (0, 0)),        # fc b
        ],
        out_specs=pl.BlockSpec((TB, C_PAD), lambda b, tok: (b, 0)),
        scratch_shapes=[
            pltpu.VMEM((rows_scratch, E), jnp.float32),   # gathered embeddings
        ],
    )
    out = pl.pallas_call(
        textcnn_kernel,
        out_shape=jax.ShapeDtypeStruct((B_pad, C_PAD), jnp.float32),
        grid_spec=grid_spec,
        compiler_params=pltpu.CompilerParams(
            dimension_semantics=("parallel",)),
    )(tok_flat, packed["emb"], packed["w_fused"], packed["b_fused"],
      packed["mask"], packed["fc_w"], packed["fc_b"])
    return out[:B, :packed["num_classes"]]


def textcnn_reference(tokens, params, kernel_sizes):
    """Pure-JAX f32 reference mirroring the PyTorch forward (uses lax.conv)."""
    emb = jnp.take(params["emb"], tokens, axis=0)              # (B, L, E)
    x = jnp.transpose(emb, (0, 2, 1))                          # (B, E, L)  NCL
    pooled = []
    for w_flat, b, k in zip(params["w"], params["b"], kernel_sizes):
        F_ = w_flat.shape[0]
        E = params["emb"].shape[1]
        w_torch = jnp.transpose(w_flat.reshape(F_, k, E), (0, 2, 1))   # (F, E, k)
        y = lax.conv_general_dilated(
            x, w_torch, window_strides=(1,), padding="VALID",
            dimension_numbers=("NCH", "OIH", "NCH"))           # (B, F, Lout)
        y = y + b.reshape(1, F_, 1)
        y = jnp.maximum(y, 0.0)
        pooled.append(jnp.max(y, axis=-1))                     # (B, F)
    feat = jnp.concatenate(pooled, axis=1)
    return feat @ params["fc_w"].T + params["fc_b"]


def init_params(key, vocab_size, embed_size, kernel_sizes, num_filters,
                num_classes):
    keys = jax.random.split(key, 2 + 2 * len(kernel_sizes) + 2)
    emb = 0.1 * jax.random.normal(keys[0], (vocab_size, embed_size),
                                  dtype=jnp.float32)
    emb = emb.at[0].set(0.0)                                   # padding_idx=0
    ws, bs = [], []
    for i, k in enumerate(kernel_sizes):
        ws.append(0.1 * jax.random.normal(
            keys[1 + 2 * i], (num_filters, k * embed_size), dtype=jnp.float32))
        bs.append(0.1 * jax.random.normal(
            keys[2 + 2 * i], (1, num_filters), dtype=jnp.float32))
    fc_w = 0.1 * jax.random.normal(
        keys[-2], (num_classes, len(kernel_sizes) * num_filters),
        dtype=jnp.float32)
    fc_b = 0.1 * jax.random.normal(keys[-1], (1, num_classes),
                                   dtype=jnp.float32)
    return {"emb": emb, "w": ws, "b": bs, "fc_w": fc_w, "fc_b": fc_b}


if __name__ == "__main__":
    vocab_size, embed_size = 50, 32
    kernel_sizes = (2, 3, 4)
    num_filters, num_classes = 8, 5
    B, L = 2, 8

    key = jax.random.PRNGKey(0)
    k_tok, k_par = jax.random.split(key)
    params = init_params(k_par, vocab_size, embed_size, kernel_sizes,
                         num_filters, num_classes)
    tokens = jax.random.randint(k_tok, (B, L), 0, vocab_size, dtype=jnp.int32)
    tokens = tokens.at[0, -2:].set(0)   # exercise padding_idx rows

    packed = pack_params(params, kernel_sizes, seq_len=L)
    out = textcnn_forward(tokens, packed)
    out = jax.block_until_ready(out)

    ref = textcnn_reference(tokens, params, kernel_sizes)
    assert out.shape == (B, num_classes)
    # bf16 matmul operands (f32 accumulation) -> loosened tolerance
    assert jnp.allclose(out, ref, atol=1e-2, rtol=1e-2), (out, ref)
    print("KERNEL_OK")
</pallas_src>

<mosaic_0001>
module attributes {stable_mosaic.version = 11 : i64} {
  func.func @textcnn_kernel(%arg0: i32, %arg1: memref<64xi32, #tpu.memory_space<smem>>, %arg2: memref<50x32xf32, #tpu.memory_space<vmem>>, %arg3: memref<128x128xbf16, #tpu.memory_space<vmem>>, %arg4: memref<1x128xf32, #tpu.memory_space<vmem>>, %arg5: memref<8x128xf32, #tpu.memory_space<vmem>>, %arg6: memref<128x128xbf16, #tpu.memory_space<vmem>>, %arg7: memref<1x128xf32, #tpu.memory_space<vmem>>, %arg8: memref<8x128xf32, #tpu.memory_space<vmem>>, %arg9: memref<67x32xf32, #tpu.memory_space<vmem>>) attributes {dimension_semantics = [#tpu.dimension_semantics<parallel>], iteration_bounds = array<i64: 1>, scalar_prefetch = 1 : i64, scratch_operands = 1 : i64, tpu.core_type = #tpu.core_type<tc>, window_params = [{pipeline_mode = #tpu.pipeline_mode<synchronous>, transform_indices = @transform_0, window_bounds = array<i64: 50, 32>}, {pipeline_mode = #tpu.pipeline_mode<synchronous>, transform_indices = @transform_1, window_bounds = array<i64: 128, 128>}, {pipeline_mode = #tpu.pipeline_mode<synchronous>, transform_indices = @transform_2, window_bounds = array<i64: 1, 128>}, {pipeline_mode = #tpu.pipeline_mode<synchronous>, transform_indices = @transform_3, window_bounds = array<i64: 8, 128>}, {pipeline_mode = #tpu.pipeline_mode<synchronous>, transform_indices = @transform_4, window_bounds = array<i64: 128, 128>}, {pipeline_mode = #tpu.pipeline_mode<synchronous>, transform_indices = @transform_5, window_bounds = array<i64: 1, 128>}, {transform_indices = @transform_6, window_bounds = array<i64: 8, 128>}]} {
    %c64_i32 = arith.constant 64 : i32
    %0 = arith.muli %arg0, %c64_i32 : i32
    %cst = arith.constant 0.000000e+00 : f32
    %1 = vector.broadcast %cst : f32 to vector<3x32xf32>
    %c64 = arith.constant 64 : index
    %c0 = arith.constant 0 : index
    %2 = vector.load %arg9[%c64, %c0] : memref<67x32xf32, #tpu.memory_space<vmem>>, vector<3x32xf32>
    tpu.vector_store %arg9[%c64, %c0], %1 {strides = array<i32>} : memref<67x32xf32, #tpu.memory_space<vmem>>, vector<3x32xf32>,
    %c0_i32 = arith.constant 0 : i32
    %3 = arith.addi %0, %c0_i32 : i32
    %4 = arith.index_cast %3 : i32 to index
    %5 = memref.load %arg1[%4] : memref<64xi32, #tpu.memory_space<smem>>
    %c0_i32_0 = arith.constant 0 : i32
    %c49_i32 = arith.constant 49 : i32
    %6 = arith.maxsi %c0_i32_0, %5 : i32
    %7 = arith.minsi %c49_i32, %6 : i32
    %8 = arith.index_cast %7 : i32 to index
    %c0_1 = arith.constant 0 : index
    %9 = vector.load %arg2[%8, %c0_1] : memref<50x32xf32, #tpu.memory_space<vmem>>, vector<1x32xf32>
    %c0_2 = arith.constant 0 : index
    %c0_3 = arith.constant 0 : index
    %10 = vector.load %arg9[%c0_2, %c0_3] : memref<67x32xf32, #tpu.memory_space<vmem>>, vector<1x32xf32>
    tpu.vector_store %arg9[%c0_2, %c0_3], %9 {strides = array<i32>} : memref<67x32xf32, #tpu.memory_space<vmem>>, vector<1x32xf32>,
    %c1_i32 = arith.constant 1 : i32
    %11 = arith.addi %0, %c1_i32 : i32
    %12 = arith.index_cast %11 : i32 to index
    %13 = memref.load %arg1[%12] : memref<64xi32, #tpu.memory_space<smem>>
    %c0_i32_4 = arith.constant 0 : i32
    %c49_i32_5 = arith.constant 49 : i32
    %14 = arith.maxsi %c0_i32_4, %13 : i32
    %15 = arith.minsi %c49_i32_5, %14 : i32
    %16 = arith.index_cast %15 : i32 to index
    %c0_6 = arith.constant 0 : index
    %17 = vector.load %arg2[%16, %c0_6] : memref<50x32xf32, #tpu.memory_space<vmem>>, vector<1x32xf32>
    %c1 = arith.constant 1 : index
    %c0_7 = arith.constant 0 : index
    %18 = vector.load %arg9[%c1, %c0_7] : memref<67x32xf32, #tpu.memory_space<vmem>>, vector<1x32xf32>
    tpu.vector_store %arg9[%c1, %c0_7], %17 {strides = array<i32>} : memref<67x32xf32, #tpu.memory_space<vmem>>, vector<1x32xf32>,
    %c2_i32 = arith.constant 2 : i32
    %19 = arith.addi %0, %c2_i32 : i32
    %20 = arith.index_cast %19 : i32 to index
    %21 = memref.load %arg1[%20] : memref<64xi32, #tpu.memory_space<smem>>
    %c0_i32_8 = arith.constant 0 : i32
    %c49_i32_9 = arith.constant 49 : i32
    %22 = arith.maxsi %c0_i32_8, %21 : i32
    %23 = arith.minsi %c49_i32_9, %22 : i32
    %24 = arith.index_cast %23 : i32 to index
    %c0_10 = arith.constant 0 : index
    %25 = vector.load %arg2[%24, %c0_10] : memref<50x32xf32, #tpu.memory_space<vmem>>, vector<1x32xf32>
    %c2 = arith.constant 2 : index
    %c0_11 = arith.constant 0 : index
    %26 = vector.load %arg9[%c2, %c0_11] : memref<67x32xf32, #tpu.memory_space<vmem>>, vector<1x32xf32>
    tpu.vector_store %arg9[%c2, %c0_11], %25 {strides = array<i32>} : memref<67x32xf32, #tpu.memory_space<vmem>>, vector<1x32xf32>,
    %c3_i32 = arith.constant 3 : i32
    %27 = arith.addi %0, %c3_i32 : i32
    %28 = arith.index_cast %27 : i32 to index
    %29 = memref.load %arg1[%28] : memref<64xi32, #tpu.memory_space<smem>>
    %c0_i32_12 = arith.constant 0 : i32
    %c49_i32_13 = arith.constant 49 : i32
    %30 = arith.maxsi %c0_i32_12, %29 : i32
    %31 = arith.minsi %c49_i32_13, %30 : i32
    %32 = arith.index_cast %31 : i32 to index
    %c0_14 = arith.constant 0 : index
    %33 = vector.load %arg2[%32, %c0_14] : memref<50x32xf32, #tpu.memory_space<vmem>>, vector<1x32xf32>
    %c3 = arith.constant 3 : index
    %c0_15 = arith.constant 0 : index
    %34 = vector.load %arg9[%c3, %c0_15] : memref<67x32xf32, #tpu.memory_space<vmem>>, vector<1x32xf32>
    tpu.vector_store %arg9[%c3, %c0_15], %33 {strides = array<i32>} : memref<67x32xf32, #tpu.memory_space<vmem>>, vector<1x32xf32>,
    %c4_i32 = arith.constant 4 : i32
    %35 = arith.addi %0, %c4_i32 : i32
    %36 = arith.index_cast %35 : i32 to index
    %37 = memref.load %arg1[%36] : memref<64xi32, #tpu.memory_space<smem>>
    %c0_i32_16 = arith.constant 0 : i32
    %c49_i32_17 = arith.constant 49 : i32
    %38 = arith.maxsi %c0_i32_16, %37 : i32
    %39 = arith.minsi %c49_i32_17, %38 : i32
    %40 = arith.index_cast %39 : i32 to index
    %c0_18 = arith.constant 0 : index
    %41 = vector.load %arg2[%40, %c0_18] : memref<50x32xf32, #tpu.memory_space<vmem>>, vector<1x32xf32>
    %c4 = arith.constant 4 : index
    %c0_19 = arith.constant 0 : index
    %42 = vector.load %arg9[%c4, %c0_19] : memref<67x32xf32, #tpu.memory_space<vmem>>, vector<1x32xf32>
    tpu.vector_store %arg9[%c4, %c0_19], %41 {strides = array<i32>} : memref<67x32xf32, #tpu.memory_space<vmem>>, vector<1x32xf32>,
    %c5_i32 = arith.constant 5 : i32
    %43 = arith.addi %0, %c5_i32 : i32
    %44 = arith.index_cast %43 : i32 to index
    %45 = memref.load %arg1[%44] : memref<64xi32, #tpu.memory_space<smem>>
    %c0_i32_20 = arith.constant 0 : i32
    %c49_i32_21 = arith.constant 49 : i32
    %46 = arith.maxsi %c0_i32_20, %45 : i32
    %47 = arith.minsi %c49_i32_21, %46 : i32
    %48 = arith.index_cast %47 : i32 to index
    %c0_22 = arith.constant 0 : index
    %49 = vector.load %arg2[%48, %c0_22] : memref<50x32xf32, #tpu.memory_space<vmem>>, vector<1x32xf32>
    %c5 = arith.constant 5 : index
    %c0_23 = arith.constant 0 : index
    %50 = vector.load %arg9[%c5, %c0_23] : memref<67x32xf32, #tpu.memory_space<vmem>>, vector<1x32xf32>
    tpu.vector_store %arg9[%c5, %c0_23], %49 {strides = array<i32>} : memref<67x32xf32, #tpu.memory_space<vmem>>, vector<1x32xf32>,
    %c6_i32 = arith.constant 6 : i32
    %51 = arith.addi %0, %c6_i32 : i32
    %52 = arith.index_cast %51 : i32 to index
    %53 = memref.load %arg1[%52] : memref<64xi32, #tpu.memory_space<smem>>
    %c0_i32_24 = arith.constant 0 : i32
    %c49_i32_25 = arith.constant 49 : i32
    %54 = arith.maxsi %c0_i32_24, %53 : i32
    %55 = arith.minsi %c49_i32_25, %54 : i32
    %56 = arith.index_cast %55 : i32 to index
    %c0_26 = arith.constant 0 : index
    %57 = vector.load %arg2[%56, %c0_26] : memref<50x32xf32, #tpu.memory_space<vmem>>, vector<1x32xf32>
    %c6 = arith.constant 6 : index
    %c0_27 = arith.constant 0 : index
    %58 = vector.load %arg9[%c6, %c0_27] : memref<67x32xf32, #tpu.memory_space<vmem>>, vector<1x32xf32>
    tpu.vector_store %arg9[%c6, %c0_27], %57 {strides = array<i32>} : memref<67x32xf32, #tpu.memory_space<vmem>>, vector<1x32xf32>,
    %c7_i32 = arith.constant 7 : i32
    %59 = arith.addi %0, %c7_i32 : i32
    %60 = arith.index_cast %59 : i32 to index
    %61 = memref.load %arg1[%60] : memref<64xi32, #tpu.memory_space<smem>>
    %c0_i32_28 = arith.constant 0 : i32
    %c49_i32_29 = arith.constant 49 : i32
    %62 = arith.maxsi %c0_i32_28, %61 : i32
    %63 = arith.minsi %c49_i32_29, %62 : i32
    %64 = arith.index_cast %63 : i32 to index
    %c0_30 = arith.constant 0 : index
    %65 = vector.load %arg2[%64, %c0_30] : memref<50x32xf32, #tpu.memory_space<vmem>>, vector<1x32xf32>
    %c7 = arith.constant 7 : index
    %c0_31 = arith.constant 0 : index
    %66 = vector.load %arg9[%c7, %c0_31] : memref<67x32xf32, #tpu.memory_space<vmem>>, vector<1x32xf32>
    tpu.vector_store %arg9[%c7, %c0_31], %65 {strides = array<i32>} : memref<67x32xf32, #tpu.memory_space<vmem>>, vector<1x32xf32>,
    %c8_i32 = arith.constant 8 : i32
    %67 = arith.addi %0, %c8_i32 : i32
    %68 = arith.index_cast %67 : i32 to index
    %69 = memref.load %arg1[%68] : memref<64xi32, #tpu.memory_space<smem>>
    %c0_i32_32 = arith.constant 0 : i32
    %c49_i32_33 = arith.constant 49 : i32
    %70 = arith.maxsi %c0_i32_32, %69 : i32
    %71 = arith.minsi %c49_i32_33, %70 : i32
    %72 = arith.index_cast %71 : i32 to index
    %c0_34 = arith.constant 0 : index
    %73 = vector.load %arg2[%72, %c0_34] : memref<50x32xf32, #tpu.memory_space<vmem>>, vector<1x32xf32>
    %c8 = arith.constant 8 : index
    %c0_35 = arith.constant 0 : index
    %74 = vector.load %arg9[%c8, %c0_35] : memref<67x32xf32, #tpu.memory_space<vmem>>, vector<1x32xf32>
    tpu.vector_store %arg9[%c8, %c0_35], %73 {strides = array<i32>} : memref<67x32xf32, #tpu.memory_space<vmem>>, vector<1x32xf32>,
    %c9_i32 = arith.constant 9 : i32
    %75 = arith.addi %0, %c9_i32 : i32
    %76 = arith.index_cast %75 : i32 to index
    %77 = memref.load %arg1[%76] : memref<64xi32, #tpu.memory_space<smem>>
    %c0_i32_36 = arith.constant 0 : i32
    %c49_i32_37 = arith.constant 49 : i32
    %78 = arith.maxsi %c0_i32_36, %77 : i32
    %79 = arith.minsi %c49_i32_37, %78 : i32
    %80 = arith.index_cast %79 : i32 to index
    %c0_38 = arith.constant 0 : index
    %81 = vector.load %arg2[%80, %c0_38] : memref<50x32xf32, #tpu.memory_space<vmem>>, vector<1x32xf32>
    %c9 = arith.constant 9 : index
    %c0_39 = arith.constant 0 : index
    %82 = vector.load %arg9[%c9, %c0_39] : memref<67x32xf32, #tpu.memory_space<vmem>>, vector<1x32xf32>
    tpu.vector_store %arg9[%c9, %c0_39], %81 {strides = array<i32>} : memref<67x32xf32, #tpu.memory_space<vmem>>, vector<1x32xf32>,
    %c10_i32 = arith.constant 10 : i32
    %83 = arith.addi %0, %c10_i32 : i32
    %84 = arith.index_cast %83 : i32 to index
    %85 = memref.load %arg1[%84] : memref<64xi32, #tpu.memory_space<smem>>
    %c0_i32_40 = arith.constant 0 : i32
    %c49_i32_41 = arith.constant 49 : i32
    %86 = arith.maxsi %c0_i32_40, %85 : i32
    %87 = arith.minsi %c49_i32_41, %86 : i32
    %88 = arith.index_cast %87 : i32 to index
    %c0_42 = arith.constant 0 : index
    %89 = vector.load %arg2[%88, %c0_42] : memref<50x32xf32, #tpu.memory_space<vmem>>, vector<1x32xf32>
    %c10 = arith.constant 10 : index
    %c0_43 = arith.constant 0 : index
    %90 = vector.load %arg9[%c10, %c0_43] : memref<67x32xf32, #tpu.memory_space<vmem>>, vector<1x32xf32>
    tpu.vector_store %arg9[%c10, %c0_43], %89 {strides = array<i32>} : memref<67x32xf32, #tpu.memory_space<vmem>>, vector<1x32xf32>,
    %c11_i32 = arith.constant 11 : i32
    %91 = arith.addi %0, %c11_i32 : i32
    %92 = arith.index_cast %91 : i32 to index
    %93 = memref.load %arg1[%92] : memref<64xi32, #tpu.memory_space<smem>>
    %c0_i32_44 = arith.constant 0 : i32
    %c49_i32_45 = arith.constant 49 : i32
    %94 = arith.maxsi %c0_i32_44, %93 : i32
    %95 = arith.minsi %c49_i32_45, %94 : i32
    %96 = arith.index_cast %95 : i32 to index
    %c0_46 = arith.constant 0 : index
    %97 = vector.load %arg2[%96, %c0_46] : memref<50x32xf32, #tpu.memory_space<vmem>>, vector<1x32xf32>
    %c11 = arith.constant 11 : index
    %c0_47 = arith.constant 0 : index
    %98 = vector.load %arg9[%c11, %c0_47] : memref<67x32xf32, #tpu.memory_space<vmem>>, vector<1x32xf32>
    tpu.vector_store %arg9[%c11, %c0_47], %97 {strides = array<i32>} : memref<67x32xf32, #tpu.memory_space<vmem>>, vector<1x32xf32>,
    %c12_i32 = arith.constant 12 : i32
    %99 = arith.addi %0, %c12_i32 : i32
    %100 = arith.index_cast %99 : i32 to index
    %101 = memref.load %arg1[%100] : memref<64xi32, #tpu.memory_space<smem>>
    %c0_i32_48 = arith.constant 0 : i32
    %c49_i32_49 = arith.constant 49 : i32
    %102 = arith.maxsi %c0_i32_48, %101 : i32
    %103 = arith.minsi %c49_i32_49, %102 : i32
    %104 = arith.index_cast %103 : i32 to index
    %c0_50 = arith.constant 0 : index
    %105 = vector.load %arg2[%104, %c0_50] : memref<50x32xf32, #tpu.memory_space<vmem>>, vector<1x32xf32>
    %c12 = arith.constant 12 : index
    %c0_51 = arith.constant 0 : index
    %106 = vector.load %arg9[%c12, %c0_51] : memref<67x32xf32, #tpu.memory_space<vmem>>, vector<1x32xf32>
    tpu.vector_store %arg9[%c12, %c0_51], %105 {strides = array<i32>} : memref<67x32xf32, #tpu.memory_space<vmem>>, vector<1x32xf32>,
    %c13_i32 = arith.constant 13 : i32
    %107 = arith.addi %0, %c13_i32 : i32
    %108 = arith.index_cast %107 : i32 to index
    %109 = memref.load %arg1[%108] : memref<64xi32, #tpu.memory_space<smem>>
    %c0_i32_52 = arith.constant 0 : i32
    %c49_i32_53 = arith.constant 49 : i32
    %110 = arith.maxsi %c0_i32_52, %109 : i32
    %111 = arith.minsi %c49_i32_53, %110 : i32
    %112 = arith.index_cast %111 : i32 to index
    %c0_54 = arith.constant 0 : index
    %113 = vector.load %arg2[%112, %c0_54] : memref<50x32xf32, #tpu.memory_space<vmem>>, vector<1x32xf32>
    %c13 = arith.constant 13 : index
    %c0_55 = arith.constant 0 : index
    %114 = vector.load %arg9[%c13, %c0_55] : memref<67x32xf32, #tpu.memory_space<vmem>>, vector<1x32xf32>
    tpu.vector_store %arg9[%c13, %c0_55], %113 {strides = array<i32>} : memref<67x32xf32, #tpu.memory_space<vmem>>, vector<1x32xf32>,
    %c14_i32 = arith.constant 14 : i32
    %115 = arith.addi %0, %c14_i32 : i32
    %116 = arith.index_cast %115 : i32 to index
    %117 = memref.load %arg1[%116] : memref<64xi32, #tpu.memory_space<smem>>
    %c0_i32_56 = arith.constant 0 : i32
    %c49_i32_57 = arith.constant 49 : i32
    %118 = arith.maxsi %c0_i32_56, %117 : i32
    %119 = arith.minsi %c49_i32_57, %118 : i32
    %120 = arith.index_cast %119 : i32 to index
    %c0_58 = arith.constant 0 : index
    %121 = vector.load %arg2[%120, %c0_58] : memref<50x32xf32, #tpu.memory_space<vmem>>, vector<1x32xf32>
    %c14 = arith.constant 14 : index
    %c0_59 = arith.constant 0 : index
    %122 = vector.load %arg9[%c14, %c0_59] : memref<67x32xf32, #tpu.memory_space<vmem>>, vector<1x32xf32>
    tpu.vector_store %arg9[%c14, %c0_59], %121 {strides = array<i32>} : memref<67x32xf32, #tpu.memory_space<vmem>>, vector<1x32xf32>,
    %c15_i32 = arith.constant 15 : i32
    %123 = arith.addi %0, %c15_i32 : i32
    %124 = arith.index_cast %123 : i32 to index
    %125 = memref.load %arg1[%124] : memref<64xi32, #tpu.memory_space<smem>>
    %c0_i32_60 = arith.constant 0 : i32
    %c49_i32_61 = arith.constant 49 : i32
    %126 = arith.maxsi %c0_i32_60, %125 : i32
    %127 = arith.minsi %c49_i32_61, %126 : i32
    %128 = arith.index_cast %127 : i32 to index
    %c0_62 = arith.constant 0 : index
    %129 = vector.load %arg2[%128, %c0_62] : memref<50x32xf32, #tpu.memory_space<vmem>>, vector<1x32xf32>
    %c15 = arith.constant 15 : index
    %c0_63 = arith.constant 0 : index
    %130 = vector.load %arg9[%c15, %c0_63] : memref<67x32xf32, #tpu.memory_space<vmem>>, vector<1x32xf32>
    tpu.vector_store %arg9[%c15, %c0_63], %129 {strides = array<i32>} : memref<67x32xf32, #tpu.memory_space<vmem>>, vector<1x32xf32>,
    %c16_i32 = arith.constant 16 : i32
    %131 = arith.addi %0, %c16_i32 : i32
    %132 = arith.index_cast %131 : i32 to index
    %133 = memref.load %arg1[%132] : memref<64xi32, #tpu.memory_space<smem>>
    %c0_i32_64 = arith.constant 0 : i32
    %c49_i32_65 = arith.constant 49 : i32
    %134 = arith.maxsi %c0_i32_64, %133 : i32
    %135 = arith.minsi %c49_i32_65, %134 : i32
    %136 = arith.index_cast %135 : i32 to index
    %c0_66 = arith.constant 0 : index
    %137 = vector.load %arg2[%136, %c0_66] : memref<50x32xf32, #tpu.memory_space<vmem>>, vector<1x32xf32>
    %c16 = arith.constant 16 : index
    %c0_67 = arith.constant 0 : index
    %138 = vector.load %arg9[%c16, %c0_67] : memref<67x32xf32, #tpu.memory_space<vmem>>, vector<1x32xf32>
    tpu.vector_store %arg9[%c16, %c0_67], %137 {strides = array<i32>} : memref<67x32xf32, #tpu.memory_space<vmem>>, vector<1x32xf32>,
    %c17_i32 = arith.constant 17 : i32
    %139 = arith.addi %0, %c17_i32 : i32
    %140 = arith.index_cast %139 : i32 to index
    %141 = memref.load %arg1[%140] : memref<64xi32, #tpu.memory_space<smem>>
    %c0_i32_68 = arith.constant 0 : i32
    %c49_i32_69 = arith.constant 49 : i32
    %142 = arith.maxsi %c0_i32_68, %141 : i32
    %143 = arith.minsi %c49_i32_69, %142 : i32
    %144 = arith.index_cast %143 : i32 to index
    %c0_70 = arith.constant 0 : index
    %145 = vector.load %arg2[%144, %c0_70] : memref<50x32xf32, #tpu.memory_space<vmem>>, vector<1x32xf32>
    %c17 = arith.constant 17 : index
    %c0_71 = arith.constant 0 : index
    %146 = vector.load %arg9[%c17, %c0_71] : memref<67x32xf32, #tpu.memory_space<vmem>>, vector<1x32xf32>
    tpu.vector_store %arg9[%c17, %c0_71], %145 {strides = array<i32>} : memref<67x32xf32, #tpu.memory_space<vmem>>, vector<1x32xf32>,
    %c18_i32 = arith.constant 18 : i32
    %147 = arith.addi %0, %c18_i32 : i32
    %148 = arith.index_cast %147 : i32 to index
    %149 = memref.load %arg1[%148] : memref<64xi32, #tpu.memory_space<smem>>
    %c0_i32_72 = arith.constant 0 : i32
    %c49_i32_73 = arith.constant 49 : i32
    %150 = arith.maxsi %c0_i32_72, %149 : i32
    %151 = arith.minsi %c49_i32_73, %150 : i32
    %152 = arith.index_cast %151 : i32 to index
    %c0_74 = arith.constant 0 : index
    %153 = vector.load %arg2[%152, %c0_74] : memref<50x32xf32, #tpu.memory_space<vmem>>, vector<1x32xf32>
    %c18 = arith.constant 18 : index
    %c0_75 = arith.constant 0 : index
    %154 = vector.load %arg9[%c18, %c0_75] : memref<67x32xf32, #tpu.memory_space<vmem>>, vector<1x32xf32>
    tpu.vector_store %arg9[%c18, %c0_75], %153 {strides = array<i32>} : memref<67x32xf32, #tpu.memory_space<vmem>>, vector<1x32xf32>,
    %c19_i32 = arith.constant 19 : i32
    %155 = arith.addi %0, %c19_i32 : i32
    %156 = arith.index_cast %155 : i32 to index
    %157 = memref.load %arg1[%156] : memref<64xi32, #tpu.memory_space<smem>>
    %c0_i32_76 = arith.constant 0 : i32
    %c49_i32_77 = arith.constant 49 : i32
    %158 = arith.maxsi %c0_i32_76, %157 : i32
    %159 = arith.minsi %c49_i32_77, %158 : i32
    %160 = arith.index_cast %159 : i32 to index
    %c0_78 = arith.constant 0 : index
    %161 = vector.load %arg2[%160, %c0_78] : memref<50x32xf32, #tpu.memory_space<vmem>>, vector<1x32xf32>
    %c19 = arith.constant 19 : index
    %c0_79 = arith.constant 0 : index
    %162 = vector.load %arg9[%c19, %c0_79] : memref<67x32xf32, #tpu.memory_space<vmem>>, vector<1x32xf32>
    tpu.vector_store %arg9[%c19, %c0_79], %161 {strides = array<i32>} : memref<67x32xf32, #tpu.memory_space<vmem>>, vector<1x32xf32>,
    %c20_i32 = arith.constant 20 : i32
    %163 = arith.addi %0, %c20_i32 : i32
    %164 = arith.index_cast %163 : i32 to index
    %165 = memref.load %arg1[%164] : memref<64xi32, #tpu.memory_space<smem>>
    %c0_i32_80 = arith.constant 0 : i32
    %c49_i32_81 = arith.constant 49 : i32
    %166 = arith.maxsi %c0_i32_80, %165 : i32
    %167 = arith.minsi %c49_i32_81, %166 : i32
    %168 = arith.index_cast %167 : i32 to index
    %c0_82 = arith.constant 0 : index
    %169 = vector.load %arg2[%168, %c0_82] : memref<50x32xf32, #tpu.memory_space<vmem>>, vector<1x32xf32>
    %c20 = arith.constant 20 : index
    %c0_83 = arith.constant 0 : index
    %170 = vector.load %arg9[%c20, %c0_83] : memref<67x32xf32, #tpu.memory_space<vmem>>, vector<1x32xf32>
    tpu.vector_store %arg9[%c20, %c0_83], %169 {strides = array<i32>} : memref<67x32xf32, #tpu.memory_space<vmem>>, vector<1x32xf32>,
    %c21_i32 = arith.constant 21 : i32
    %171 = arith.addi %0, %c21_i32 : i32
    %172 = arith.index_cast %171 : i32 to index
    %173 = memref.load %arg1[%172] : memref<64xi32, #tpu.memory_space<smem>>
    %c0_i32_84 = arith.constant 0 : i32
    %c49_i32_85 = arith.constant 49 : i32
    %174 = arith.maxsi %c0_i32_84, %173 : i32
    %175 = arith.minsi %c49_i32_85, %174 : i32
    %176 = arith.index_cast %175 : i32 to index
    %c0_86 = arith.constant 0 : index
    %177 = vector.load %arg2[%176, %c0_86] : memref<50x32xf32, #tpu.memory_space<vmem>>, vector<1x32xf32>
    %c21 = arith.constant 21 : index
    %c0_87 = arith.constant 0 : index
    %178 = vector.load %arg9[%c21, %c0_87] : memref<67x32xf32, #tpu.memory_space<vmem>>, vector<1x32xf32>
    tpu.vector_store %arg9[%c21, %c0_87], %177 {strides = array<i32>} : memref<67x32xf32, #tpu.memory_space<vmem>>, vector<1x32xf32>,
    %c22_i32 = arith.constant 22 : i32
    %179 = arith.addi %0, %c22_i32 : i32
    %180 = arith.index_cast %179 : i32 to index
    %181 = memref.load %arg1[%180] : memref<64xi32, #tpu.memory_space<smem>>
    %c0_i32_88 = arith.constant 0 : i32
    %c49_i32_89 = arith.constant 49 : i32
    %182 = arith.maxsi %c0_i32_88, %181 : i32
    %183 = arith.minsi %c49_i32_89, %182 : i32
    %184 = arith.index_cast %183 : i32 to index
    %c0_90 = arith.constant 0 : index
    %185 = vector.load %arg2[%184, %c0_90] : memref<50x32xf32, #tpu.memory_space<vmem>>, vector<1x32xf32>
    %c22 = arith.constant 22 : index
    %c0_91 = arith.constant 0 : index
    %186 = vector.load %arg9[%c22, %c0_91] : memref<67x32xf32, #tpu.memory_space<vmem>>, vector<1x32xf32>
    tpu.vector_store %arg9[%c22, %c0_91], %185 {strides = array<i32>} : memref<67x32xf32, #tpu.memory_space<vmem>>, vector<1x32xf32>,
    %c23_i32 = arith.constant 23 : i32
    %187 = arith.addi %0, %c23_i32 : i32
    %188 = arith.index_cast %187 : i32 to index
    %189 = memref.load %arg1[%188] : memref<64xi32, #tpu.memory_space<smem>>
    %c0_i32_92 = arith.constant 0 : i32
    %c49_i32_93 = arith.constant 49 : i32
    %190 = arith.maxsi %c0_i32_92, %189 : i32
    %191 = arith.minsi %c49_i32_93, %190 : i32
    %192 = arith.index_cast %191 : i32 to index
    %c0_94 = arith.constant 0 : index
    %193 = vector.load %arg2[%192, %c0_94] : memref<50x32xf32, #tpu.memory_space<vmem>>, vector<1x32xf32>
    %c23 = arith.constant 23 : index
    %c0_95 = arith.constant 0 : index
    %194 = vector.load %arg9[%c23, %c0_95] : memref<67x32xf32, #tpu.memory_space<vmem>>, vector<1x32xf32>
    tpu.vector_store %arg9[%c23, %c0_95], %193 {strides = array<i32>} : memref<67x32xf32, #tpu.memory_space<vmem>>, vector<1x32xf32>,
    %c24_i32 = arith.constant 24 : i32
    %195 = arith.addi %0, %c24_i32 : i32
    %196 = arith.index_cast %195 : i32 to index
    %197 = memref.load %arg1[%196] : memref<64xi32, #tpu.memory_space<smem>>
    %c0_i32_96 = arith.constant 0 : i32
    %c49_i32_97 = arith.constant 49 : i32
    %198 = arith.maxsi %c0_i32_96, %197 : i32
    %199 = arith.minsi %c49_i32_97, %198 : i32
    %200 = arith.index_cast %199 : i32 to index
    %c0_98 = arith.constant 0 : index
    %201 = vector.load %arg2[%200, %c0_98] : memref<50x32xf32, #tpu.memory_space<vmem>>, vector<1x32xf32>
    %c24 = arith.constant 24 : index
    %c0_99 = arith.constant 0 : index
    %202 = vector.load %arg9[%c24, %c0_99] : memref<67x32xf32, #tpu.memory_space<vmem>>, vector<1x32xf32>
    tpu.vector_store %arg9[%c24, %c0_99], %201 {strides = array<i32>} : memref<67x32xf32, #tpu.memory_space<vmem>>, vector<1x32xf32>,
    %c25_i32 = arith.constant 25 : i32
    %203 = arith.addi %0, %c25_i32 : i32
    %204 = arith.index_cast %203 : i32 to index
    %205 = memref.load %arg1[%204] : memref<64xi32, #tpu.memory_space<smem>>
    %c0_i32_100 = arith.constant 0 : i32
    %c49_i32_101 = arith.constant 49 : i32
    %206 = arith.maxsi %c0_i32_100, %205 : i32
    %207 = arith.minsi %c49_i32_101, %206 : i32
    %208 = arith.index_cast %207 : i32 to index
    %c0_102 = arith.constant 0 : index
    %209 = vector.load %arg2[%208, %c0_102] : memref<50x32xf32, #tpu.memory_space<vmem>>, vector<1x32xf32>
    %c25 = arith.constant 25 : index
    %c0_103 = arith.constant 0 : index
    %210 = vector.load %arg9[%c25, %c0_103] : memref<67x32xf32, #tpu.memory_space<vmem>>, vector<1x32xf32>
    tpu.vector_store %arg9[%c25, %c0_103], %209 {strides = array<i32>} : memref<67x32xf32, #tpu.memory_space<vmem>>, vector<1x32xf32>,
    %c26_i32 = arith.constant 26 : i32
    %211 = arith.addi %0, %c26_i32 : i32
    %212 = arith.index_cast %211 : i32 to index
    %213 = memref.load %arg1[%212] : memref<64xi32, #tpu.memory_space<smem>>
    %c0_i32_104 = arith.constant 0 : i32
    %c49_i32_105 = arith.constant 49 : i32
    %214 = arith.maxsi %c0_i32_104, %213 : i32
    %215 = arith.minsi %c49_i32_105, %214 : i32
    %216 = arith.index_cast %215 : i32 to index
    %c0_106 = arith.constant 0 : index
    %217 = vector.load %arg2[%216, %c0_106] : memref<50x32xf32, #tpu.memory_space<vmem>>, vector<1x32xf32>
    %c26 = arith.constant 26 : index
    %c0_107 = arith.constant 0 : index
    %218 = vector.load %arg9[%c26, %c0_107] : memref<67x32xf32, #tpu.memory_space<vmem>>, vector<1x32xf32>
    tpu.vector_store %arg9[%c26, %c0_107], %217 {strides = array<i32>} : memref<67x32xf32, #tpu.memory_space<vmem>>, vector<1x32xf32>,
    %c27_i32 = arith.constant 27 : i32
    %219 = arith.addi %0, %c27_i32 : i32
    %220 = arith.index_cast %219 : i32 to index
    %221 = memref.load %arg1[%220] : memref<64xi32, #tpu.memory_space<smem>>
    %c0_i32_108 = arith.constant 0 : i32
    %c49_i32_109 = arith.constant 49 : i32
    %222 = arith.maxsi %c0_i32_108, %221 : i32
    %223 = arith.minsi %c49_i32_109, %222 : i32
    %224 = arith.index_cast %223 : i32 to index
    %c0_110 = arith.constant 0 : index
    %225 = vector.load %arg2[%224, %c0_110] : memref<50x32xf32, #tpu.memory_space<vmem>>, vector<1x32xf32>
    %c27 = arith.constant 27 : index
    %c0_111 = arith.constant 0 : index
    %226 = vector.load %arg9[%c27, %c0_111] : memref<67x32xf32, #tpu.memory_space<vmem>>, vector<1x32xf32>
    tpu.vector_store %arg9[%c27, %c0_111], %225 {strides = array<i32>} : memref<67x32xf32, #tpu.memory_space<vmem>>, vector<1x32xf32>,
    %c28_i32 = arith.constant 28 : i32
    %227 = arith.addi %0, %c28_i32 : i32
    %228 = arith.index_cast %227 : i32 to index
    %229 = memref.load %arg1[%228] : memref<64xi32, #tpu.memory_space<smem>>
    %c0_i32_112 = arith.constant 0 : i32
    %c49_i32_113 = arith.constant 49 : i32
    %230 = arith.maxsi %c0_i32_112, %229 : i32
    %231 = arith.minsi %c49_i32_113, %230 : i32
    %232 = arith.index_cast %231 : i32 to index
    %c0_114 = arith.constant 0 : index
    %233 = vector.load %arg2[%232, %c0_114] : memref<50x32xf32, #tpu.memory_space<vmem>>, vector<1x32xf32>
    %c28 = arith.constant 28 : index
    %c0_115 = arith.constant 0 : index
    %234 = vector.load %arg9[%c28, %c0_115] : memref<67x32xf32, #tpu.memory_space<vmem>>, vector<1x32xf32>
    tpu.vector_store %arg9[%c28, %c0_115], %233 {strides = array<i32>} : memref<67x32xf32, #tpu.memory_space<vmem>>, vector<1x32xf32>,
    %c29_i32 = arith.constant 29 : i32
    %235 = arith.addi %0, %c29_i32 : i32
    %236 = arith.index_cast %235 : i32 to index
    %237 = memref.load %arg1[%236] : memref<64xi32, #tpu.memory_space<smem>>
    %c0_i32_116 = arith.constant 0 : i32
    %c49_i32_117 = arith.constant 49 : i32
    %238 = arith.maxsi %c0_i32_116, %237 : i32
    %239 = arith.minsi %c49_i32_117, %238 : i32
    %240 = arith.index_cast %239 : i32 to index
    %c0_118 = arith.constant 0 : index
    %241 = vector.load %arg2[%240, %c0_118] : memref<50x32xf32, #tpu.memory_space<vmem>>, vector<1x32xf32>
    %c29 = arith.constant 29 : index
    %c0_119 = arith.constant 0 : index
    %242 = vector.load %arg9[%c29, %c0_119] : memref<67x32xf32, #tpu.memory_space<vmem>>, vector<1x32xf32>
    tpu.vector_store %arg9[%c29, %c0_119], %241 {strides = array<i32>} : memref<67x32xf32, #tpu.memory_space<vmem>>, vector<1x32xf32>,
    %c30_i32 = arith.constant 30 : i32
    %243 = arith.addi %0, %c30_i32 : i32
    %244 = arith.index_cast %243 : i32 to index
    %245 = memref.load %arg1[%244] : memref<64xi32, #tpu.memory_space<smem>>
    %c0_i32_120 = arith.constant 0 : i32
    %c49_i32_121 = arith.constant 49 : i32
    %246 = arith.maxsi %c0_i32_120, %245 : i32
    %247 = arith.minsi %c49_i32_121, %246 : i32
    %248 = arith.index_cast %247 : i32 to index
    %c0_122 = arith.constant 0 : index
    %249 = vector.load %arg2[%248, %c0_122] : memref<50x32xf32, #tpu.memory_space<vmem>>, vector<1x32xf32>
    %c30 = arith.constant 30 : index
    %c0_123 = arith.constant 0 : index
    %250 = vector.load %arg9[%c30, %c0_123] : memref<67x32xf32, #tpu.memory_space<vmem>>, vector<1x32xf32>
    tpu.vector_store %arg9[%c30, %c0_123], %249 {strides = array<i32>} : memref<67x32xf32, #tpu.memory_space<vmem>>, vector<1x32xf32>,
    %c31_i32 = arith.constant 31 : i32
    %251 = arith.addi %0, %c31_i32 : i32
    %252 = arith.index_cast %251 : i32 to index
    %253 = memref.load %arg1[%252] : memref<64xi32, #tpu.memory_space<smem>>
    %c0_i32_124 = arith.constant 0 : i32
    %c49_i32_125 = arith.constant 49 : i32
    %254 = arith.maxsi %c0_i32_124, %253 : i32
    %255 = arith.minsi %c49_i32_125, %254 : i32
    %256 = arith.index_cast %255 : i32 to index
    %c0_126 = arith.constant 0 : index
    %257 = vector.load %arg2[%256, %c0_126] : memref<50x32xf32, #tpu.memory_space<vmem>>, vector<1x32xf32>
    %c31 = arith.constant 31 : index
    %c0_127 = arith.constant 0 : index
    %258 = vector.load %arg9[%c31, %c0_127] : memref<67x32xf32, #tpu.memory_space<vmem>>, vector<1x32xf32>
    tpu.vector_store %arg9[%c31, %c0_127], %257 {strides = array<i32>} : memref<67x32xf32, #tpu.memory_space<vmem>>, vector<1x32xf32>,
    %c32_i32 = arith.constant 32 : i32
    %259 = arith.addi %0, %c32_i32 : i32
    %260 = arith.index_cast %259 : i32 to index
    %261 = memref.load %arg1[%260] : memref<64xi32, #tpu.memory_space<smem>>
    %c0_i32_128 = arith.constant 0 : i32
    %c49_i32_129 = arith.constant 49 : i32
    %262 = arith.maxsi %c0_i32_128, %261 : i32
    %263 = arith.minsi %c49_i32_129, %262 : i32
    %264 = arith.index_cast %263 : i32 to index
    %c0_130 = arith.constant 0 : index
    %265 = vector.load %arg2[%264, %c0_130] : memref<50x32xf32, #tpu.memory_space<vmem>>, vector<1x32xf32>
    %c32 = arith.constant 32 : index
    %c0_131 = arith.constant 0 : index
    %266 = vector.load %arg9[%c32, %c0_131] : memref<67x32xf32, #tpu.memory_space<vmem>>, vector<1x32xf32>
    tpu.vector_store %arg9[%c32, %c0_131], %265 {strides = array<i32>} : memref<67x32xf32, #tpu.memory_space<vmem>>, vector<1x32xf32>,
    %c33_i32 = arith.constant 33 : i32
    %267 = arith.addi %0, %c33_i32 : i32
    %268 = arith.index_cast %267 : i32 to index
    %269 = memref.load %arg1[%268] : memref<64xi32, #tpu.memory_space<smem>>
    %c0_i32_132 = arith.constant 0 : i32
    %c49_i32_133 = arith.constant 49 : i32
    %270 = arith.maxsi %c0_i32_132, %269 : i32
    %271 = arith.minsi %c49_i32_133, %270 : i32
    %272 = arith.index_cast %271 : i32 to index
    %c0_134 = arith.constant 0 : index
    %273 = vector.load %arg2[%272, %c0_134] : memref<50x32xf32, #tpu.memory_space<vmem>>, vector<1x32xf32>
    %c33 = arith.constant 33 : index
    %c0_135 = arith.constant 0 : index
    %274 = vector.load %arg9[%c33, %c0_135] : memref<67x32xf32, #tpu.memory_space<vmem>>, vector<1x32xf32>
    tpu.vector_store %arg9[%c33, %c0_135], %273 {strides = array<i32>} : memref<67x32xf32, #tpu.memory_space<vmem>>, vector<1x32xf32>,
    %c34_i32 = arith.constant 34 : i32
    %275 = arith.addi %0, %c34_i32 : i32
    %276 = arith.index_cast %275 : i32 to index
    %277 = memref.load %arg1[%276] : memref<64xi32, #tpu.memory_space<smem>>
    %c0_i32_136 = arith.constant 0 : i32
    %c49_i32_137 = arith.constant 49 : i32
    %278 = arith.maxsi %c0_i32_136, %277 : i32
    %279 = arith.minsi %c49_i32_137, %278 : i32
    %280 = arith.index_cast %279 : i32 to index
    %c0_138 = arith.constant 0 : index
    %281 = vector.load %arg2[%280, %c0_138] : memref<50x32xf32, #tpu.memory_space<vmem>>, vector<1x32xf32>
    %c34 = arith.constant 34 : index
    %c0_139 = arith.constant 0 : index
    %282 = vector.load %arg9[%c34, %c0_139] : memref<67x32xf32, #tpu.memory_space<vmem>>, vector<1x32xf32>
    tpu.vector_store %arg9[%c34, %c0_139], %281 {strides = array<i32>} : memref<67x32xf32, #tpu.memory_space<vmem>>, vector<1x32xf32>,
    %c35_i32 = arith.constant 35 : i32
    %283 = arith.addi %0, %c35_i32 : i32
    %284 = arith.index_cast %283 : i32 to index
    %285 = memref.load %arg1[%284] : memref<64xi32, #tpu.memory_space<smem>>
    %c0_i32_140 = arith.constant 0 : i32
    %c49_i32_141 = arith.constant 49 : i32
    %286 = arith.maxsi %c0_i32_140, %285 : i32
    %287 = arith.minsi %c49_i32_141, %286 : i32
    %288 = arith.index_cast %287 : i32 to index
    %c0_142 = arith.constant 0 : index
    %289 = vector.load %arg2[%288, %c0_142] : memref<50x32xf32, #tpu.memory_space<vmem>>, vector<1x32xf32>
    %c35 = arith.constant 35 : index
    %c0_143 = arith.constant 0 : index
    %290 = vector.load %arg9[%c35, %c0_143] : memref<67x32xf32, #tpu.memory_space<vmem>>, vector<1x32xf32>
    tpu.vector_store %arg9[%c35, %c0_143], %289 {strides = array<i32>} : memref<67x32xf32, #tpu.memory_space<vmem>>, vector<1x32xf32>,
    %c36_i32 = arith.constant 36 : i32
    %291 = arith.addi %0, %c36_i32 : i32
    %292 = arith.index_cast %291 : i32 to index
    %293 = memref.load %arg1[%292] : memref<64xi32, #tpu.memory_space<smem>>
    %c0_i32_144 = arith.constant 0 : i32
    %c49_i32_145 = arith.constant 49 : i32
    %294 = arith.maxsi %c0_i32_144, %293 : i32
    %295 = arith.minsi %c49_i32_145, %294 : i32
    %296 = arith.index_cast %295 : i32 to index
    %c0_146 = arith.constant 0 : index
    %297 = vector.load %arg2[%296, %c0_146] : memref<50x32xf32, #tpu.memory_space<vmem>>, vector<1x32xf32>
    %c36 = arith.constant 36 : index
    %c0_147 = arith.constant 0 : index
    %298 = vector.load %arg9[%c36, %c0_147] : memref<67x32xf32, #tpu.memory_space<vmem>>, vector<1x32xf32>
    tpu.vector_store %arg9[%c36, %c0_147], %297 {strides = array<i32>} : memref<67x32xf32, #tpu.memory_space<vmem>>, vector<1x32xf32>,
    %c37_i32 = arith.constant 37 : i32
    %299 = arith.addi %0, %c37_i32 : i32
    %300 = arith.index_cast %299 : i32 to index
    %301 = memref.load %arg1[%300] : memref<64xi32, #tpu.memory_space<smem>>
    %c0_i32_148 = arith.constant 0 : i32
    %c49_i32_149 = arith.constant 49 : i32
    %302 = arith.maxsi %c0_i32_148, %301 : i32
    %303 = arith.minsi %c49_i32_149, %302 : i32
    %304 = arith.index_cast %303 : i32 to index
    %c0_150 = arith.constant 0 : index
    %305 = vector.load %arg2[%304, %c0_150] : memref<50x32xf32, #tpu.memory_space<vmem>>, vector<1x32xf32>
    %c37 = arith.constant 37 : index
    %c0_151 = arith.constant 0 : index
    %306 = vector.load %arg9[%c37, %c0_151] : memref<67x32xf32, #tpu.memory_space<vmem>>, vector<1x32xf32>
    tpu.vector_store %arg9[%c37, %c0_151], %305 {strides = array<i32>} : memref<67x32xf32, #tpu.memory_space<vmem>>, vector<1x32xf32>,
    %c38_i32 = arith.constant 38 : i32
    %307 = arith.addi %0, %c38_i32 : i32
    %308 = arith.index_cast %307 : i32 to index
    %309 = memref.load %arg1[%308] : memref<64xi32, #tpu.memory_space<smem>>
    %c0_i32_152 = arith.constant 0 : i32
    %c49_i32_153 = arith.constant 49 : i32
    %310 = arith.maxsi %c0_i32_152, %309 : i32
    %311 = arith.minsi %c49_i32_153, %310 : i32
    %312 = arith.index_cast %311 : i32 to index
    %c0_154 = arith.constant 0 : index
    %313 = vector.load %arg2[%312, %c0_154] : memref<50x32xf32, #tpu.memory_space<vmem>>, vector<1x32xf32>
    %c38 = arith.constant 38 : index
    %c0_155 = arith.constant 0 : index
    %314 = vector.load %arg9[%c38, %c0_155] : memref<67x32xf32, #tpu.memory_space<vmem>>, vector<1x32xf32>
    tpu.vector_store %arg9[%c38, %c0_155], %313 {strides = array<i32>} : memref<67x32xf32, #tpu.memory_space<vmem>>, vector<1x32xf32>,
    %c39_i32 = arith.constant 39 : i32
    %315 = arith.addi %0, %c39_i32 : i32
    %316 = arith.index_cast %315 : i32 to index
    %317 = memref.load %arg1[%316] : memref<64xi32, #tpu.memory_space<smem>>
    %c0_i32_156 = arith.constant 0 : i32
    %c49_i32_157 = arith.constant 49 : i32
    %318 = arith.maxsi %c0_i32_156, %317 : i32
    %319 = arith.minsi %c49_i32_157, %318 : i32
    %320 = arith.index_cast %319 : i32 to index
    %c0_158 = arith.constant 0 : index
    %321 = vector.load %arg2[%320, %c0_158] : memref<50x32xf32, #tpu.memory_space<vmem>>, vector<1x32xf32>
    %c39 = arith.constant 39 : index
    %c0_159 = arith.constant 0 : index
    %322 = vector.load %arg9[%c39, %c0_159] : memref<67x32xf32, #tpu.memory_space<vmem>>, vector<1x32xf32>
    tpu.vector_store %arg9[%c39, %c0_159], %321 {strides = array<i32>} : memref<67x32xf32, #tpu.memory_space<vmem>>, vector<1x32xf32>,
    %c40_i32 = arith.constant 40 : i32
    %323 = arith.addi %0, %c40_i32 : i32
    %324 = arith.index_cast %323 : i32 to index
    %325 = memref.load %arg1[%324] : memref<64xi32, #tpu.memory_space<smem>>
    %c0_i32_160 = arith.constant 0 : i32
    %c49_i32_161 = arith.constant 49 : i32
    %326 = arith.maxsi %c0_i32_160, %325 : i32
    %327 = arith.minsi %c49_i32_161, %326 : i32
    %328 = arith.index_cast %327 : i32 to index
    %c0_162 = arith.constant 0 : index
    %329 = vector.load %arg2[%328, %c0_162] : memref<50x32xf32, #tpu.memory_space<vmem>>, vector<1x32xf32>
    %c40 = arith.constant 40 : index
    %c0_163 = arith.constant 0 : index
    %330 = vector.load %arg9[%c40, %c0_163] : memref<67x32xf32, #tpu.memory_space<vmem>>, vector<1x32xf32>
    tpu.vector_store %arg9[%c40, %c0_163], %329 {strides = array<i32>} : memref<67x32xf32, #tpu.memory_space<vmem>>, vector<1x32xf32>,
    %c41_i32 = arith.constant 41 : i32
    %331 = arith.addi %0, %c41_i32 : i32
    %332 = arith.index_cast %331 : i32 to index
    %333 = memref.load %arg1[%332] : memref<64xi32, #tpu.memory_space<smem>>
    %c0_i32_164 = arith.constant 0 : i32
    %c49_i32_165 = arith.constant 49 : i32
    %334 = arith.maxsi %c0_i32_164, %333 : i32
    %335 = arith.minsi %c49_i32_165, %334 : i32
    %336 = arith.index_cast %335 : i32 to index
    %c0_166 = arith.constant 0 : index
    %337 = vector.load %arg2[%336, %c0_166] : memref<50x32xf32, #tpu.memory_space<vmem>>, vector<1x32xf32>
    %c41 = arith.constant 41 : index
    %c0_167 = arith.constant 0 : index
    %338 = vector.load %arg9[%c41, %c0_167] : memref<67x32xf32, #tpu.memory_space<vmem>>, vector<1x32xf32>
    tpu.vector_store %arg9[%c41, %c0_167], %337 {strides = array<i32>} : memref<67x32xf32, #tpu.memory_space<vmem>>, vector<1x32xf32>,
    %c42_i32 = arith.constant 42 : i32
    %339 = arith.addi %0, %c42_i32 : i32
    %340 = arith.index_cast %339 : i32 to index
    %341 = memref.load %arg1[%340] : memref<64xi32, #tpu.memory_space<smem>>
    %c0_i32_168 = arith.constant 0 : i32
    %c49_i32_169 = arith.constant 49 : i32
    %342 = arith.maxsi %c0_i32_168, %341 : i32
    %343 = arith.minsi %c49_i32_169, %342 : i32
    %344 = arith.index_cast %343 : i32 to index
    %c0_170 = arith.constant 0 : index
    %345 = vector.load %arg2[%344, %c0_170] : memref<50x32xf32, #tpu.memory_space<vmem>>, vector<1x32xf32>
    %c42 = arith.constant 42 : index
    %c0_171 = arith.constant 0 : index
    %346 = vector.load %arg9[%c42, %c0_171] : memref<67x32xf32, #tpu.memory_space<vmem>>, vector<1x32xf32>
    tpu.vector_store %arg9[%c42, %c0_171], %345 {strides = array<i32>} : memref<67x32xf32, #tpu.memory_space<vmem>>, vector<1x32xf32>,
    %c43_i32 = arith.constant 43 : i32
    %347 = arith.addi %0, %c43_i32 : i32
    %348 = arith.index_cast %347 : i32 to index
    %349 = memref.load %arg1[%348] : memref<64xi32, #tpu.memory_space<smem>>
    %c0_i32_172 = arith.constant 0 : i32
    %c49_i32_173 = arith.constant 49 : i32
    %350 = arith.maxsi %c0_i32_172, %349 : i32
    %351 = arith.minsi %c49_i32_173, %350 : i32
    %352 = arith.index_cast %351 : i32 to index
    %c0_174 = arith.constant 0 : index
    %353 = vector.load %arg2[%352, %c0_174] : memref<50x32xf32, #tpu.memory_space<vmem>>, vector<1x32xf32>
    %c43 = arith.constant 43 : index
    %c0_175 = arith.constant 0 : index
    %354 = vector.load %arg9[%c43, %c0_175] : memref<67x32xf32, #tpu.memory_space<vmem>>, vector<1x32xf32>
    tpu.vector_store %arg9[%c43, %c0_175], %353 {strides = array<i32>} : memref<67x32xf32, #tpu.memory_space<vmem>>, vector<1x32xf32>,
    %c44_i32 = arith.constant 44 : i32
    %355 = arith.addi %0, %c44_i32 : i32
    %356 = arith.index_cast %355 : i32 to index
    %357 = memref.load %arg1[%356] : memref<64xi32, #tpu.memory_space<smem>>
    %c0_i32_176 = arith.constant 0 : i32
    %c49_i32_177 = arith.constant 49 : i32
    %358 = arith.maxsi %c0_i32_176, %357 : i32
    %359 = arith.minsi %c49_i32_177, %358 : i32
    %360 = arith.index_cast %359 : i32 to index
    %c0_178 = arith.constant 0 : index
    %361 = vector.load %arg2[%360, %c0_178] : memref<50x32xf32, #tpu.memory_space<vmem>>, vector<1x32xf32>
    %c44 = arith.constant 44 : index
    %c0_179 = arith.constant 0 : index
    %362 = vector.load %arg9[%c44, %c0_179] : memref<67x32xf32, #tpu.memory_space<vmem>>, vector<1x32xf32>
    tpu.vector_store %arg9[%c44, %c0_179], %361 {strides = array<i32>} : memref<67x32xf32, #tpu.memory_space<vmem>>, vector<1x32xf32>,
    %c45_i32 = arith.constant 45 : i32
    %363 = arith.addi %0, %c45_i32 : i32
    %364 = arith.index_cast %363 : i32 to index
    %365 = memref.load %arg1[%364] : memref<64xi32, #tpu.memory_space<smem>>
    %c0_i32_180 = arith.constant 0 : i32
    %c49_i32_181 = arith.constant 49 : i32
    %366 = arith.maxsi %c0_i32_180, %365 : i32
    %367 = arith.minsi %c49_i32_181, %366 : i32
    %368 = arith.index_cast %367 : i32 to index
    %c0_182 = arith.constant 0 : index
    %369 = vector.load %arg2[%368, %c0_182] : memref<50x32xf32, #tpu.memory_space<vmem>>, vector<1x32xf32>
    %c45 = arith.constant 45 : index
    %c0_183 = arith.constant 0 : index
    %370 = vector.load %arg9[%c45, %c0_183] : memref<67x32xf32, #tpu.memory_space<vmem>>, vector<1x32xf32>
    tpu.vector_store %arg9[%c45, %c0_183], %369 {strides = array<i32>} : memref<67x32xf32, #tpu.memory_space<vmem>>, vector<1x32xf32>,
    %c46_i32 = arith.constant 46 : i32
    %371 = arith.addi %0, %c46_i32 : i32
    %372 = arith.index_cast %371 : i32 to index
    %373 = memref.load %arg1[%372] : memref<64xi32, #tpu.memory_space<smem>>
    %c0_i32_184 = arith.constant 0 : i32
    %c49_i32_185 = arith.constant 49 : i32
    %374 = arith.maxsi %c0_i32_184, %373 : i32
    %375 = arith.minsi %c49_i32_185, %374 : i32
    %376 = arith.index_cast %375 : i32 to index
    %c0_186 = arith.constant 0 : index
    %377 = vector.load %arg2[%376, %c0_186] : memref<50x32xf32, #tpu.memory_space<vmem>>, vector<1x32xf32>
    %c46 = arith.constant 46 : index
    %c0_187 = arith.constant 0 : index
    %378 = vector.load %arg9[%c46, %c0_187] : memref<67x32xf32, #tpu.memory_space<vmem>>, vector<1x32xf32>
    tpu.vector_store %arg9[%c46, %c0_187], %377 {strides = array<i32>} : memref<67x32xf32, #tpu.memory_space<vmem>>, vector<1x32xf32>,
    %c47_i32 = arith.constant 47 : i32
    %379 = arith.addi %0, %c47_i32 : i32
    %380 = arith.index_cast %379 : i32 to index
    %381 = memref.load %arg1[%380] : memref<64xi32, #tpu.memory_space<smem>>
    %c0_i32_188 = arith.constant 0 : i32
    %c49_i32_189 = arith.constant 49 : i32
    %382 = arith.maxsi %c0_i32_188, %381 : i32
    %383 = arith.minsi %c49_i32_189, %382 : i32
    %384 = arith.index_cast %383 : i32 to index
    %c0_190 = arith.constant 0 : index
    %385 = vector.load %arg2[%384, %c0_190] : memref<50x32xf32, #tpu.memory_space<vmem>>, vector<1x32xf32>
    %c47 = arith.constant 47 : index
    %c0_191 = arith.constant 0 : index
    %386 = vector.load %arg9[%c47, %c0_191] : memref<67x32xf32, #tpu.memory_space<vmem>>, vector<1x32xf32>
    tpu.vector_store %arg9[%c47, %c0_191], %385 {strides = array<i32>} : memref<67x32xf32, #tpu.memory_space<vmem>>, vector<1x32xf32>,
    %c48_i32 = arith.constant 48 : i32
    %387 = arith.addi %0, %c48_i32 : i32
    %388 = arith.index_cast %387 : i32 to index
    %389 = memref.load %arg1[%388] : memref<64xi32, #tpu.memory_space<smem>>
    %c0_i32_192 = arith.constant 0 : i32
    %c49_i32_193 = arith.constant 49 : i32
    %390 = arith.maxsi %c0_i32_192, %389 : i32
    %391 = arith.minsi %c49_i32_193, %390 : i32
    %392 = arith.index_cast %391 : i32 to index
    %c0_194 = arith.constant 0 : index
    %393 = vector.load %arg2[%392, %c0_194] : memref<50x32xf32, #tpu.memory_space<vmem>>, vector<1x32xf32>
    %c48 = arith.constant 48 : index
    %c0_195 = arith.constant 0 : index
    %394 = vector.load %arg9[%c48, %c0_195] : memref<67x32xf32, #tpu.memory_space<vmem>>, vector<1x32xf32>
    tpu.vector_store %arg9[%c48, %c0_195], %393 {strides = array<i32>} : memref<67x32xf32, #tpu.memory_space<vmem>>, vector<1x32xf32>,
    %c49_i32_196 = arith.constant 49 : i32
    %395 = arith.addi %0, %c49_i32_196 : i32
    %396 = arith.index_cast %395 : i32 to index
    %397 = memref.load %arg1[%396] : memref<64xi32, #tpu.memory_space<smem>>
    %c0_i32_197 = arith.constant 0 : i32
    %c49_i32_198 = arith.constant 49 : i32
    %398 = arith.maxsi %c0_i32_197, %397 : i32
    %399 = arith.minsi %c49_i32_198, %398 : i32
    %400 = arith.index_cast %399 : i32 to index
    %c0_199 = arith.constant 0 : index
    %401 = vector.load %arg2[%400, %c0_199] : memref<50x32xf32, #tpu.memory_space<vmem>>, vector<1x32xf32>
    %c49 = arith.constant 49 : index
    %c0_200 = arith.constant 0 : index
    %402 = vector.load %arg9[%c49, %c0_200] : memref<67x32xf32, #tpu.memory_space<vmem>>, vector<1x32xf32>
    tpu.vector_store %arg9[%c49, %c0_200], %401 {strides = array<i32>} : memref<67x32xf32, #tpu.memory_space<vmem>>, vector<1x32xf32>,
    %c50_i32 = arith.constant 50 : i32
    %403 = arith.addi %0, %c50_i32 : i32
    %404 = arith.index_cast %403 : i32 to index
    %405 = memref.load %arg1[%404] : memref<64xi32, #tpu.memory_space<smem>>
    %c0_i32_201 = arith.constant 0 : i32
    %c49_i32_202 = arith.constant 49 : i32
    %406 = arith.maxsi %c0_i32_201, %405 : i32
    %407 = arith.minsi %c49_i32_202, %406 : i32
    %408 = arith.index_cast %407 : i32 to index
    %c0_203 = arith.constant 0 : index
    %409 = vector.load %arg2[%408, %c0_203] : memref<50x32xf32, #tpu.memory_space<vmem>>, vector<1x32xf32>
    %c50 = arith.constant 50 : index
    %c0_204 = arith.constant 0 : index
    %410 = vector.load %arg9[%c50, %c0_204] : memref<67x32xf32, #tpu.memory_space<vmem>>, vector<1x32xf32>
    tpu.vector_store %arg9[%c50, %c0_204], %409 {strides = array<i32>} : memref<67x32xf32, #tpu.memory_space<vmem>>, vector<1x32xf32>,
    %c51_i32 = arith.constant 51 : i32
    %411 = arith.addi %0, %c51_i32 : i32
    %412 = arith.index_cast %411 : i32 to index
    %413 = memref.load %arg1[%412] : memref<64xi32, #tpu.memory_space<smem>>
    %c0_i32_205 = arith.constant 0 : i32
    %c49_i32_206 = arith.constant 49 : i32
    %414 = arith.maxsi %c0_i32_205, %413 : i32
    %415 = arith.minsi %c49_i32_206, %414 : i32
    %416 = arith.index_cast %415 : i32 to index
    %c0_207 = arith.constant 0 : index
    %417 = vector.load %arg2[%416, %c0_207] : memref<50x32xf32, #tpu.memory_space<vmem>>, vector<1x32xf32>
    %c51 = arith.constant 51 : index
    %c0_208 = arith.constant 0 : index
    %418 = vector.load %arg9[%c51, %c0_208] : memref<67x32xf32, #tpu.memory_space<vmem>>, vector<1x32xf32>
    tpu.vector_store %arg9[%c51, %c0_208], %417 {strides = array<i32>} : memref<67x32xf32, #tpu.memory_space<vmem>>, vector<1x32xf32>,
    %c52_i32 = arith.constant 52 : i32
    %419 = arith.addi %0, %c52_i32 : i32
    %420 = arith.index_cast %419 : i32 to index
    %421 = memref.load %arg1[%420] : memref<64xi32, #tpu.memory_space<smem>>
    %c0_i32_209 = arith.constant 0 : i32
    %c49_i32_210 = arith.constant 49 : i32
    %422 = arith.maxsi %c0_i32_209, %421 : i32
    %423 = arith.minsi %c49_i32_210, %422 : i32
    %424 = arith.index_cast %423 : i32 to index
    %c0_211 = arith.constant 0 : index
    %425 = vector.load %arg2[%424, %c0_211] : memref<50x32xf32, #tpu.memory_space<vmem>>, vector<1x32xf32>
    %c52 = arith.constant 52 : index
    %c0_212 = arith.constant 0 : index
    %426 = vector.load %arg9[%c52, %c0_212] : memref<67x32xf32, #tpu.memory_space<vmem>>, vector<1x32xf32>
    tpu.vector_store %arg9[%c52, %c0_212], %425 {strides = array<i32>} : memref<67x32xf32, #tpu.memory_space<vmem>>, vector<1x32xf32>,
    %c53_i32 = arith.constant 53 : i32
    %427 = arith.addi %0, %c53_i32 : i32
    %428 = arith.index_cast %427 : i32 to index
    %429 = memref.load %arg1[%428] : memref<64xi32, #tpu.memory_space<smem>>
    %c0_i32_213 = arith.constant 0 : i32
    %c49_i32_214 = arith.constant 49 : i32
    %430 = arith.maxsi %c0_i32_213, %429 : i32
    %431 = arith.minsi %c49_i32_214, %430 : i32
    %432 = arith.index_cast %431 : i32 to index
    %c0_215 = arith.constant 0 : index
    %433 = vector.load %arg2[%432, %c0_215] : memref<50x32xf32, #tpu.memory_space<vmem>>, vector<1x32xf32>
    %c53 = arith.constant 53 : index
    %c0_216 = arith.constant 0 : index
    %434 = vector.load %arg9[%c53, %c0_216] : memref<67x32xf32, #tpu.memory_space<vmem>>, vector<1x32xf32>
    tpu.vector_store %arg9[%c53, %c0_216], %433 {strides = array<i32>} : memref<67x32xf32, #tpu.memory_space<vmem>>, vector<1x32xf32>,
    %c54_i32 = arith.constant 54 : i32
    %435 = arith.addi %0, %c54_i32 : i32
    %436 = arith.index_cast %435 : i32 to index
    %437 = memref.load %arg1[%436] : memref<64xi32, #tpu.memory_space<smem>>
    %c0_i32_217 = arith.constant 0 : i32
    %c49_i32_218 = arith.constant 49 : i32
    %438 = arith.maxsi %c0_i32_217, %437 : i32
    %439 = arith.minsi %c49_i32_218, %438 : i32
    %440 = arith.index_cast %439 : i32 to index
    %c0_219 = arith.constant 0 : index
    %441 = vector.load %arg2[%440, %c0_219] : memref<50x32xf32, #tpu.memory_space<vmem>>, vector<1x32xf32>
    %c54 = arith.constant 54 : index
    %c0_220 = arith.constant 0 : index
    %442 = vector.load %arg9[%c54, %c0_220] : memref<67x32xf32, #tpu.memory_space<vmem>>, vector<1x32xf32>
    tpu.vector_store %arg9[%c54, %c0_220], %441 {strides = array<i32>} : memref<67x32xf32, #tpu.memory_space<vmem>>, vector<1x32xf32>,
    %c55_i32 = arith.constant 55 : i32
    %443 = arith.addi %0, %c55_i32 : i32
    %444 = arith.index_cast %443 : i32 to index
    %445 = memref.load %arg1[%444] : memref<64xi32, #tpu.memory_space<smem>>
    %c0_i32_221 = arith.constant 0 : i32
    %c49_i32_222 = arith.constant 49 : i32
    %446 = arith.maxsi %c0_i32_221, %445 : i32
    %447 = arith.minsi %c49_i32_222, %446 : i32
    %448 = arith.index_cast %447 : i32 to index
    %c0_223 = arith.constant 0 : index
    %449 = vector.load %arg2[%448, %c0_223] : memref<50x32xf32, #tpu.memory_space<vmem>>, vector<1x32xf32>
    %c55 = arith.constant 55 : index
    %c0_224 = arith.constant 0 : index
    %450 = vector.load %arg9[%c55, %c0_224] : memref<67x32xf32, #tpu.memory_space<vmem>>, vector<1x32xf32>
    tpu.vector_store %arg9[%c55, %c0_224], %449 {strides = array<i32>} : memref<67x32xf32, #tpu.memory_space<vmem>>, vector<1x32xf32>,
    %c56_i32 = arith.constant 56 : i32
    %451 = arith.addi %0, %c56_i32 : i32
    %452 = arith.index_cast %451 : i32 to index
    %453 = memref.load %arg1[%452] : memref<64xi32, #tpu.memory_space<smem>>
    %c0_i32_225 = arith.constant 0 : i32
    %c49_i32_226 = arith.constant 49 : i32
    %454 = arith.maxsi %c0_i32_225, %453 : i32
    %455 = arith.minsi %c49_i32_226, %454 : i32
    %456 = arith.index_cast %455 : i32 to index
    %c0_227 = arith.constant 0 : index
    %457 = vector.load %arg2[%456, %c0_227] : memref<50x32xf32, #tpu.memory_space<vmem>>, vector<1x32xf32>
    %c56 = arith.constant 56 : index
    %c0_228 = arith.constant 0 : index
    %458 = vector.load %arg9[%c56, %c0_228] : memref<67x32xf32, #tpu.memory_space<vmem>>, vector<1x32xf32>
    tpu.vector_store %arg9[%c56, %c0_228], %457 {strides = array<i32>} : memref<67x32xf32, #tpu.memory_space<vmem>>, vector<1x32xf32>,
    %c57_i32 = arith.constant 57 : i32
    %459 = arith.addi %0, %c57_i32 : i32
    %460 = arith.index_cast %459 : i32 to index
    %461 = memref.load %arg1[%460] : memref<64xi32, #tpu.memory_space<smem>>
    %c0_i32_229 = arith.constant 0 : i32
    %c49_i32_230 = arith.constant 49 : i32
    %462 = arith.maxsi %c0_i32_229, %461 : i32
    %463 = arith.minsi %c49_i32_230, %462 : i32
    %464 = arith.index_cast %463 : i32 to index
    %c0_231 = arith.constant 0 : index
    %465 = vector.load %arg2[%464, %c0_231] : memref<50x32xf32, #tpu.memory_space<vmem>>, vector<1x32xf32>
    %c57 = arith.constant 57 : index
    %c0_232 = arith.constant 0 : index
    %466 = vector.load %arg9[%c57, %c0_232] : memref<67x32xf32, #tpu.memory_space<vmem>>, vector<1x32xf32>
    tpu.vector_store %arg9[%c57, %c0_232], %465 {strides = array<i32>} : memref<67x32xf32, #tpu.memory_space<vmem>>, vector<1x32xf32>,
    %c58_i32 = arith.constant 58 : i32
    %467 = arith.addi %0, %c58_i32 : i32
    %468 = arith.index_cast %467 : i32 to index
    %469 = memref.load %arg1[%468] : memref<64xi32, #tpu.memory_space<smem>>
    %c0_i32_233 = arith.constant 0 : i32
    %c49_i32_234 = arith.constant 49 : i32
    %470 = arith.maxsi %c0_i32_233, %469 : i32
    %471 = arith.minsi %c49_i32_234, %470 : i32
    %472 = arith.index_cast %471 : i32 to index
    %c0_235 = arith.constant 0 : index
    %473 = vector.load %arg2[%472, %c0_235] : memref<50x32xf32, #tpu.memory_space<vmem>>, vector<1x32xf32>
    %c58 = arith.constant 58 : index
    %c0_236 = arith.constant 0 : index
    %474 = vector.load %arg9[%c58, %c0_236] : memref<67x32xf32, #tpu.memory_space<vmem>>, vector<1x32xf32>
    tpu.vector_store %arg9[%c58, %c0_236], %473 {strides = array<i32>} : memref<67x32xf32, #tpu.memory_space<vmem>>, vector<1x32xf32>,
    %c59_i32 = arith.constant 59 : i32
    %475 = arith.addi %0, %c59_i32 : i32
    %476 = arith.index_cast %475 : i32 to index
    %477 = memref.load %arg1[%476] : memref<64xi32, #tpu.memory_space<smem>>
    %c0_i32_237 = arith.constant 0 : i32
    %c49_i32_238 = arith.constant 49 : i32
    %478 = arith.maxsi %c0_i32_237, %477 : i32
    %479 = arith.minsi %c49_i32_238, %478 : i32
    %480 = arith.index_cast %479 : i32 to index
    %c0_239 = arith.constant 0 : index
    %481 = vector.load %arg2[%480, %c0_239] : memref<50x32xf32, #tpu.memory_space<vmem>>, vector<1x32xf32>
    %c59 = arith.constant 59 : index
    %c0_240 = arith.constant 0 : index
    %482 = vector.load %arg9[%c59, %c0_240] : memref<67x32xf32, #tpu.memory_space<vmem>>, vector<1x32xf32>
    tpu.vector_store %arg9[%c59, %c0_240], %481 {strides = array<i32>} : memref<67x32xf32, #tpu.memory_space<vmem>>, vector<1x32xf32>,
    %c60_i32 = arith.constant 60 : i32
    %483 = arith.addi %0, %c60_i32 : i32
    %484 = arith.index_cast %483 : i32 to index
    %485 = memref.load %arg1[%484] : memref<64xi32, #tpu.memory_space<smem>>
    %c0_i32_241 = arith.constant 0 : i32
    %c49_i32_242 = arith.constant 49 : i32
    %486 = arith.maxsi %c0_i32_241, %485 : i32
    %487 = arith.minsi %c49_i32_242, %486 : i32
    %488 = arith.index_cast %487 : i32 to index
    %c0_243 = arith.constant 0 : index
    %489 = vector.load %arg2[%488, %c0_243] : memref<50x32xf32, #tpu.memory_space<vmem>>, vector<1x32xf32>
    %c60 = arith.constant 60 : index
    %c0_244 = arith.constant 0 : index
    %490 = vector.load %arg9[%c60, %c0_244] : memref<67x32xf32, #tpu.memory_space<vmem>>, vector<1x32xf32>
    tpu.vector_store %arg9[%c60, %c0_244], %489 {strides = array<i32>} : memref<67x32xf32, #tpu.memory_space<vmem>>, vector<1x32xf32>,
    %c61_i32 = arith.constant 61 : i32
    %491 = arith.addi %0, %c61_i32 : i32
    %492 = arith.index_cast %491 : i32 to index
    %493 = memref.load %arg1[%492] : memref<64xi32, #tpu.memory_space<smem>>
    %c0_i32_245 = arith.constant 0 : i32
    %c49_i32_246 = arith.constant 49 : i32
    %494 = arith.maxsi %c0_i32_245, %493 : i32
    %495 = arith.minsi %c49_i32_246, %494 : i32
    %496 = arith.index_cast %495 : i32 to index
    %c0_247 = arith.constant 0 : index
    %497 = vector.load %arg2[%496, %c0_247] : memref<50x32xf32, #tpu.memory_space<vmem>>, vector<1x32xf32>
    %c61 = arith.constant 61 : index
    %c0_248 = arith.constant 0 : index
    %498 = vector.load %arg9[%c61, %c0_248] : memref<67x32xf32, #tpu.memory_space<vmem>>, vector<1x32xf32>
    tpu.vector_store %arg9[%c61, %c0_248], %497 {strides = array<i32>} : memref<67x32xf32, #tpu.memory_space<vmem>>, vector<1x32xf32>,
    %c62_i32 = arith.constant 62 : i32
    %499 = arith.addi %0, %c62_i32 : i32
    %500 = arith.index_cast %499 : i32 to index
    %501 = memref.load %arg1[%500] : memref<64xi32, #tpu.memory_space<smem>>
    %c0_i32_249 = arith.constant 0 : i32
    %c49_i32_250 = arith.constant 49 : i32
    %502 = arith.maxsi %c0_i32_249, %501 : i32
    %503 = arith.minsi %c49_i32_250, %502 : i32
    %504 = arith.index_cast %503 : i32 to index
    %c0_251 = arith.constant 0 : index
    %505 = vector.load %arg2[%504, %c0_251] : memref<50x32xf32, #tpu.memory_space<vmem>>, vector<1x32xf32>
    %c62 = arith.constant 62 : index
    %c0_252 = arith.constant 0 : index
    %506 = vector.load %arg9[%c62, %c0_252] : memref<67x32xf32, #tpu.memory_space<vmem>>, vector<1x32xf32>
    tpu.vector_store %arg9[%c62, %c0_252], %505 {strides = array<i32>} : memref<67x32xf32, #tpu.memory_space<vmem>>, vector<1x32xf32>,
    %c63_i32 = arith.constant 63 : i32
    %507 = arith.addi %0, %c63_i32 : i32
    %508 = arith.index_cast %507 : i32 to index
    %509 = memref.load %arg1[%508] : memref<64xi32, #tpu.memory_space<smem>>
    %c0_i32_253 = arith.constant 0 : i32
    %c49_i32_254 = arith.constant 49 : i32
    %510 = arith.maxsi %c0_i32_253, %509 : i32
    %511 = arith.minsi %c49_i32_254, %510 : i32
    %512 = arith.index_cast %511 : i32 to index
    %c0_255 = arith.constant 0 : index
    %513 = vector.load %arg2[%512, %c0_255] : memref<50x32xf32, #tpu.memory_space<vmem>>, vector<1x32xf32>
    %c63 = arith.constant 63 : index
    %c0_256 = arith.constant 0 : index
    %514 = vector.load %arg9[%c63, %c0_256] : memref<67x32xf32, #tpu.memory_space<vmem>>, vector<1x32xf32>
    tpu.vector_store %arg9[%c63, %c0_256], %513 {strides = array<i32>} : memref<67x32xf32, #tpu.memory_space<vmem>>, vector<1x32xf32>,
    %c0_257 = arith.constant 0 : index
    %c0_258 = arith.constant 0 : index
    %515 = vector.load %arg9[%c0_257, %c0_258] : memref<67x32xf32, #tpu.memory_space<vmem>>, vector<64x32xf32>
    %c1_259 = arith.constant 1 : index
    %c0_260 = arith.constant 0 : index
    %516 = vector.load %arg9[%c1_259, %c0_260] : memref<67x32xf32, #tpu.memory_space<vmem>>, vector<64x32xf32>
    %c2_261 = arith.constant 2 : index
    %c0_262 = arith.constant 0 : index
    %517 = vector.load %arg9[%c2_261, %c0_262] : memref<67x32xf32, #tpu.memory_space<vmem>>, vector<64x32xf32>
    %c3_263 = arith.constant 3 : index
    %c0_264 = arith.constant 0 : index
    %518 = vector.load %arg9[%c3_263, %c0_264] : memref<67x32xf32, #tpu.memory_space<vmem>>, vector<64x32xf32>
    %519 = tpu.concatenate %515, %516, %517, %518 in 1 : vector<64x32xf32>, vector<64x32xf32>, vector<64x32xf32>, vector<64x32xf32> -> vector<64x128xf32>
    %520 = arith.truncf %519 : vector<64x128xf32> to vector<64x128xbf16>
    %c0_265 = arith.constant 0 : index
    %c0_266 = arith.constant 0 : index
    %521 = vector.load %arg3[%c0_265, %c0_266] : memref<128x128xbf16, #tpu.memory_space<vmem>>, vector<128x128xbf16>
    %cst_267 = arith.constant dense<0.000000e+00> : vector<64x128xf32>
    %522 = tpu.matmul %520, %521, %cst_267 {dimension_numbers = #tpu.dot_dimension_numbers<[1], [0], [0], [1], [0, 0, 1, 1], [], []>} : vector<64x128xbf16>, vector<128x128xbf16>, vector<64x128xf32> -> vector<64x128xf32>
    %c0_268 = arith.constant 0 : index
    %c0_269 = arith.constant 0 : index
    %523 = vector.load %arg4[%c0_268, %c0_269] : memref<1x128xf32, #tpu.memory_space<vmem>>, vector<1x128xf32>
    %524 = vector.broadcast %523 : vector<1x128xf32> to vector<64x128xf32>
    %525 = arith.addf %522, %524 : vector<64x128xf32>
    %cst_270 = arith.constant 0.000000e+00 : f32
    %526 = vector.broadcast %cst_270 : f32 to vector<64x128xf32>
    %527 = arith.maximumf %525, %526 : vector<64x128xf32>
    %528 = vector.shape_cast %527 : vector<64x128xf32> to vector<8x8x128xf32>
    %c0_271 = arith.constant 0 : index
    %c0_272 = arith.constant 0 : index
    %529 = vector.load %arg5[%c0_271, %c0_272] : memref<8x128xf32, #tpu.memory_space<vmem>>, vector<8x128xf32>
    %530 = vector.shape_cast %529 : vector<8x128xf32> to vector<1x8x128xf32>
    %531 = vector.broadcast %530 : vector<1x8x128xf32> to vector<8x8x128xf32>
    %532 = arith.mulf %528, %531 : vector<8x8x128xf32>
    %cst_273 = arith.constant dense<0xFF800000> : vector<8x128xf32>
    %533 = vector.multi_reduction <maximumf>, %532, %cst_273 [1] : vector<8x8x128xf32> to vector<8x128xf32>
    %534 = arith.truncf %533 : vector<8x128xf32> to vector<8x128xbf16>
    %c0_274 = arith.constant 0 : index
    %c0_275 = arith.constant 0 : index
    %535 = vector.load %arg6[%c0_274, %c0_275] : memref<128x128xbf16, #tpu.memory_space<vmem>>, vector<128x128xbf16>
    %cst_276 = arith.constant dense<0.000000e+00> : vector<8x128xf32>
    %536 = tpu.matmul %534, %535, %cst_276 {dimension_numbers = #tpu.dot_dimension_numbers<[1], [0], [0], [1], [0, 0, 1, 1], [], []>} : vector<8x128xbf16>, vector<128x128xbf16>, vector<8x128xf32> -> vector<8x128xf32>
    %c0_277 = arith.constant 0 : index
    %c0_278 = arith.constant 0 : index
    %537 = vector.load %arg7[%c0_277, %c0_278] : memref<1x128xf32, #tpu.memory_space<vmem>>, vector<1x128xf32>
    %538 = vector.broadcast %537 : vector<1x128xf32> to vector<8x128xf32>
    %539 = arith.addf %536, %538 : vector<8x128xf32>
    %c0_279 = arith.constant 0 : index
    %c0_280 = arith.constant 0 : index
    %540 = vector.load %arg8[%c0_279, %c0_280] : memref<8x128xf32, #tpu.memory_space<vmem>>, vector<8x128xf32>
    tpu.vector_store %arg8[%c0_279, %c0_280], %539 {strides = array<i32>} : memref<8x128xf32, #tpu.memory_space<vmem>>, vector<8x128xf32>,
    return
  }
  func.func @transform_0(%arg0: i32, %arg1: memref<64xi32, #tpu.memory_space<smem>>) -> (i32, i32) {
    %c0_i32 = arith.constant 0 : i32
    %c0_i32_0 = arith.constant 0 : i32
    %c0_i32_1 = arith.constant 0 : i32
    return %c0_i32, %c0_i32_0 : i32, i32
  }
  func.func @transform_1(%arg0: i32, %arg1: memref<64xi32, #tpu.memory_space<smem>>) -> (i32, i32) {
    %c0_i32 = arith.constant 0 : i32
    %c0_i32_0 = arith.constant 0 : i32
    %c0_i32_1 = arith.constant 0 : i32
    return %c0_i32, %c0_i32_0 : i32, i32
  }
  func.func @transform_2(%arg0: i32, %arg1: memref<64xi32, #tpu.memory_space<smem>>) -> (i32, i32) {
    %c0_i32 = arith.constant 0 : i32
    %c0_i32_0 = arith.constant 0 : i32
    %c0_i32_1 = arith.constant 0 : i32
    return %c0_i32, %c0_i32_0 : i32, i32
  }
  func.func @transform_3(%arg0: i32, %arg1: memref<64xi32, #tpu.memory_space<smem>>) -> (i32, i32) {
    %c0_i32 = arith.constant 0 : i32
    %c0_i32_0 = arith.constant 0 : i32
    %c0_i32_1 = arith.constant 0 : i32
    return %c0_i32, %c0_i32_0 : i32, i32
  }
  func.func @transform_4(%arg0: i32, %arg1: memref<64xi32, #tpu.memory_space<smem>>) -> (i32, i32) {
    %c0_i32 = arith.constant 0 : i32
    %c0_i32_0 = arith.constant 0 : i32
    %c0_i32_1 = arith.constant 0 : i32
    return %c0_i32, %c0_i32_0 : i32, i32
  }
  func.func @transform_5(%arg0: i32, %arg1: memref<64xi32, #tpu.memory_space<smem>>) -> (i32, i32) {
    %c0_i32 = arith.constant 0 : i32
    %c0_i32_0 = arith.constant 0 : i32
    %c0_i32_1 = arith.constant 0 : i32
    return %c0_i32, %c0_i32_0 : i32, i32
  }
  func.func @transform_6(%arg0: i32, %arg1: memref<64xi32, #tpu.memory_space<smem>>) -> (i32, i32) {
    %c0_i32 = arith.constant 0 : i32
    %c0_i32_0 = arith.constant 0 : i32
    return %arg0, %c0_i32 : i32, i32
  }
}

</mosaic_0001>

<llo_original>
// kernel: tpu_custom_call.1
$region0: #{tpu_custom_call.1}
  #allocation0 [shape = 'u32[]', space=smem, size = 0x4, offset = 0x4, fixed_abs, tag = 'smem constant byte address 0x4 - core index']
  #allocation1 [shape = 'u32[144,128]{1,0:T(1,128)}', space=vmem, size = 0x12000, scoped, tag = 'internal scratch']
  #allocation2 [shape = 'f32[67,32]{1,0:T(8,128)}', space=vmem, size = 0x9000, scoped, tag = 'scratch operand']
  #allocation3 [shape = 's32[1]{0}', space=sflag, size = 0x4, scoped, tag = 'scoped memory for tpu_custom_call.1']
  #allocation4 [shape = 'u8[512]{0}', space=smem, size = 0x200, scoped, tag = 'prefetched SMEM operand 0']
  %s0 = inlined_call_operand.vmem [shape: s32[64], index: 0, kind: input, shape index: {}]
  %s1 = inlined_call_operand.vmem [shape: f32[50,32], index: 1, kind: input, shape index: {}]
  %s2 = inlined_call_operand.vmem [shape: bf16[128,128], index: 2, kind: input, shape index: {}]
  %s3 = inlined_call_operand.vmem [shape: f32[1,128], index: 3, kind: input, shape index: {}]
  %s4 = inlined_call_operand.vmem [shape: f32[8,128], index: 4, kind: input, shape index: {}]
  %s5 = inlined_call_operand.hbm [shape: bf16[128,128], index: 5, kind: input, shape index: {}]
  %s6 = inlined_call_operand.vmem [shape: f32[1,128], index: 6, kind: input, shape index: {}]
  %s7 = inlined_call_operand.hbm [shape: f32[8,128], index: 7, kind: output, shape index: {}]
  %s8 = sld [smem:[#allocation0]]
  $region38: #{tpu_custom_call.1} parent=0
    _
  %s10 = ssub.s32 1, %s8
  %s11 = scalar_select 0, %s10, %s8
  %s12 = sshll.u32 %s0, 4
  %s13 = int_to_ptr.vmem [resolvable:$true] %s12
  %15 = dma.vmem_to_smem %s13, 16, [#allocation4], [#allocation3]
  %16 = dma.done [#allocation3], 16
  %17 = sfence
  $region1: #{tpu_custom_call.1} parent=0
    #allocation5 [shape = 'u8[32768]{0}', space=vmem, size = 0x8000, scoped, tag = 'input window, operand 5, single buffered']
    #allocation6 [shape = 's32[1]{0}', space=sflag, size = 0x4, scoped, tag = 'scoped memory for tpu_custom_call.1']
    #allocation7 [shape = 's32[1]{0}', space=sflag, size = 0x4, scoped, tag = 'scoped memory for tpu_custom_call.1']
    #allocation8 [shape = 'u8[4096]{0}', space=vmem, size = 0x1000, scoped, tag = 'output window, operand 0, single buffered']
    %18 = vsyncpa [#allocation6], 0
    %19 = vsyncpa [#allocation7], 0
    // Predicated region
    $region2: #{tpu_custom_call.1} parent=1 // pred_check
      _
    $region3: #{tpu_custom_call.1} parent=1 // pred_check_branch
      %21 = sbr.rel (0) target = $region5
    $region4: #{tpu_custom_call.1} parent=1 // pred_region
      _
    $region5: #{tpu_custom_call.1} parent=1 // pred_fallthru
      _
    // Predicated region
    $region6: #{tpu_custom_call.1} parent=1 // pred_check
      _
    $region7: #{tpu_custom_call.1} parent=1 // pred_check_branch
      %23 = sbr.rel (0) target = $region9
    $region8: #{tpu_custom_call.1} parent=1 // pred_region
      _
    $region9: #{tpu_custom_call.1} parent=1 // pred_fallthru
      _
    // Predicated region
    $region10: #{tpu_custom_call.1} parent=1 // pred_check
      _
    $region11: #{tpu_custom_call.1} parent=1 // pred_check_branch
      %25 = sbr.rel (0) target = $region13
    $region12: #{tpu_custom_call.1} parent=1 // pred_region
      _
    $region13: #{tpu_custom_call.1} parent=1 // pred_fallthru
      _
    // Predicated region
    $region14: #{tpu_custom_call.1} parent=1 // pred_check
      _
    $region15: #{tpu_custom_call.1} parent=1 // pred_check_branch
      %27 = sbr.rel (0) target = $region17
    $region16: #{tpu_custom_call.1} parent=1 // pred_region
      _
    $region17: #{tpu_custom_call.1} parent=1 // pred_fallthru
      _
    // Predicated region
    $region18: #{tpu_custom_call.1} parent=1 // pred_check
      _
    $region19: #{tpu_custom_call.1} parent=1 // pred_check_branch
      %29 = sbr.rel (0) target = $region21
    $region20: #{tpu_custom_call.1} parent=1 // pred_region
      %s31 = ssub.s32 1024, 1024
      %32 = vsyncadd [#allocation6], %s31
      %s33 = sshll.u32 [#allocation5], 4
      %s34 = int_to_ptr.vmem [resolvable:$true] %s33
      %39 = dma.hbm_to_vmem [thread:$0]  %s5, 1024, %s34, [#allocation6], 64, 64, 4
    $region21: #{tpu_custom_call.1} parent=1 // pred_fallthru
      _
    // Predicated region
    $region22: #{tpu_custom_call.1} parent=1 // pred_check
      _
    $region23: #{tpu_custom_call.1} parent=1 // pred_check_branch
      %41 = sbr.rel (0) target = $region25
    $region24: #{tpu_custom_call.1} parent=1 // pred_region
      _
    $region25: #{tpu_custom_call.1} parent=1 // pred_fallthru
      _
    // Predicated region
    $region26: #{tpu_custom_call.1} parent=1 // pred_check
      _
    $region27: #{tpu_custom_call.1} parent=1 // pred_check_branch
      %43 = sbr.rel (0) target = $region29
    $region28: #{tpu_custom_call.1} parent=1 // pred_region
      %44 = dma.done [#allocation6], 1024
    $region29: #{tpu_custom_call.1} parent=1 // pred_fallthru
      _
    %s46 = smul.u32 0, 64
    %vm47 = vcmask 256000
    %48 = vst.msk [vmem:[#allocation2 + $0x40] sm:$0x7] %vm47, 0.0
    %s49 = sld [smem:[#allocation4 + %s46]]
    %p50 = scmp.gt.s32.totalorder %s49, 0
    %s51 = scalar_select %p50, %s49, 0
    %p52 = scmp.lt.s32.totalorder %s51, 49
    %s53 = scalar_select %p52, %s51, 49
    %s54 = scalar_lea.vmem %s1, %s53
    %v55 = vld [vmem:[%s54] sm:$0x1]
    %vm56 = vcmask 253952
    %57 = vst.msk [vmem:[#allocation2] sm:$0x1] %vm56, %v55
    %s58 = sadd.s32 %s46, 1
    %s59 = sld [smem:[#allocation4 + %s58]]
    %p60 = scmp.gt.s32.totalorder %s59, 0
    %s61 = scalar_select %p60, %s59, 0
    %p62 = scmp.lt.s32.totalorder %s61, 49
    %s63 = scalar_select %p62, %s61, 49
    %s64 = scalar_lea.vmem %s1, %s63
    %v65 = vld [vmem:[%s64] sm:$0x1]
    %66 = vst.msk [vmem:[#allocation2 + $0x1] sm:$0x1] %vm56, %v65
    %s67 = sadd.s32 %s46, 2
    %s68 = sld [smem:[#allocation4 + %s67]]
    %p69 = scmp.gt.s32.totalorder %s68, 0
    %s70 = scalar_select %p69, %s68, 0
    %p71 = scmp.lt.s32.totalorder %s70, 49
    %s72 = scalar_select %p71, %s70, 49
    %s73 = scalar_lea.vmem %s1, %s72
    %v74 = vld [vmem:[%s73] sm:$0x1]
    %75 = vst.msk [vmem:[#allocation2 + $0x2] sm:$0x1] %vm56, %v74
    %s76 = sadd.s32 %s46, 3
    %s77 = sld [smem:[#allocation4 + %s76]]
    %p78 = scmp.gt.s32.totalorder %s77, 0
    %s79 = scalar_select %p78, %s77, 0
    %p80 = scmp.lt.s32.totalorder %s79, 49
    %s81 = scalar_select %p80, %s79, 49
    %s82 = scalar_lea.vmem %s1, %s81
    %v83 = vld [vmem:[%s82] sm:$0x1]
    %84 = vst.msk [vmem:[#allocation2 + $0x3] sm:$0x1] %vm56, %v83
    %s85 = sadd.s32 %s46, 4
    %s86 = sld [smem:[#allocation4 + %s85]]
    %p87 = scmp.gt.s32.totalorder %s86, 0
    %s88 = scalar_select %p87, %s86, 0
    %p89 = scmp.lt.s32.totalorder %s88, 49
    %s90 = scalar_select %p89, %s88, 49
    %s91 = scalar_lea.vmem %s1, %s90
    %v92 = vld [vmem:[%s91] sm:$0x1]
    %93 = vst.msk [vmem:[#allocation2 + $0x4] sm:$0x1] %vm56, %v92
    %s94 = sadd.s32 %s46, 5
    %s95 = sld [smem:[#allocation4 + %s94]]
    %p96 = scmp.gt.s32.totalorder %s95, 0
    %s97 = scalar_select %p96, %s95, 0
    %p98 = scmp.lt.s32.totalorder %s97, 49
    %s99 = scalar_select %p98, %s97, 49
    %s100 = scalar_lea.vmem %s1, %s99
    %v101 = vld [vmem:[%s100] sm:$0x1]
    %102 = vst.msk [vmem:[#allocation2 + $0x5] sm:$0x1] %vm56, %v101
    %s103 = sadd.s32 %s46, 6
    %s104 = sld [smem:[#allocation4 + %s103]]
    %p105 = scmp.gt.s32.totalorder %s104, 0
    %s106 = scalar_select %p105, %s104, 0
    %p107 = scmp.lt.s32.totalorder %s106, 49
    %s108 = scalar_select %p107, %s106, 49
    %s109 = scalar_lea.vmem %s1, %s108
    %v110 = vld [vmem:[%s109] sm:$0x1]
    %111 = vst.msk [vmem:[#allocation2 + $0x6] sm:$0x1] %vm56, %v110
    %s112 = sadd.s32 %s46, 7
    %s113 = sld [smem:[#allocation4 + %s112]]
    %p114 = scmp.gt.s32.totalorder %s113, 0
    %s115 = scalar_select %p114, %s113, 0
    %p116 = scmp.lt.s32.totalorder %s115, 49
    %s117 = scalar_select %p116, %s115, 49
    %s118 = scalar_lea.vmem %s1, %s117
    %v119 = vld [vmem:[%s118] sm:$0x1]
    %120 = vst.msk [vmem:[#allocation2 + $0x7] sm:$0x1] %vm56, %v119
    %s121 = sadd.s32 %s46, 8
    %s122 = sld [smem:[#allocation4 + %s121]]
    %p123 = scmp.gt.s32.totalorder %s122, 0
    %s124 = scalar_select %p123, %s122, 0
    %p125 = scmp.lt.s32.totalorder %s124, 49
    %s126 = scalar_select %p125, %s124, 49
    %s127 = scalar_lea.vmem %s1, %s126
    %v128 = vld [vmem:[%s127] sm:$0x1]
    %129 = vst.msk [vmem:[#allocation2 + $0x8] sm:$0x1] %vm56, %v128
    %s130 = sadd.s32 %s46, 9
    %s131 = sld [smem:[#allocation4 + %s130]]
    %p132 = scmp.gt.s32.totalorder %s131, 0
    %s133 = scalar_select %p132, %s131, 0
    %p134 = scmp.lt.s32.totalorder %s133, 49
    %s135 = scalar_select %p134, %s133, 49
    %s136 = scalar_lea.vmem %s1, %s135
    %v137 = vld [vmem:[%s136] sm:$0x1]
    %138 = vst.msk [vmem:[#allocation2 + $0x9] sm:$0x1] %vm56, %v137
    %s139 = sadd.s32 %s46, 10
    %s140 = sld [smem:[#allocation4 + %s139]]
    %p141 = scmp.gt.s32.totalorder %s140, 0
    %s142 = scalar_select %p141, %s140, 0
    %p143 = scmp.lt.s32.totalorder %s142, 49
    %s144 = scalar_select %p143, %s142, 49
    %s145 = scalar_lea.vmem %s1, %s144
    %v146 = vld [vmem:[%s145] sm:$0x1]
    %147 = vst.msk [vmem:[#allocation2 + $0xa] sm:$0x1] %vm56, %v146
    %s148 = sadd.s32 %s46, 11
    %s149 = sld [smem:[#allocation4 + %s148]]
    %p150 = scmp.gt.s32.totalorder %s149, 0
    %s151 = scalar_select %p150, %s149, 0
    %p152 = scmp.lt.s32.totalorder %s151, 49
    %s153 = scalar_select %p152, %s151, 49
    %s154 = scalar_lea.vmem %s1, %s153
    %v155 = vld [vmem:[%s154] sm:$0x1]
    %156 = vst.msk [vmem:[#allocation2 + $0xb] sm:$0x1] %vm56, %v155
    %s157 = sadd.s32 %s46, 12
    %s158 = sld [smem:[#allocation4 + %s157]]
    %p159 = scmp.gt.s32.totalorder %s158, 0
    %s160 = scalar_select %p159, %s158, 0
    %p161 = scmp.lt.s32.totalorder %s160, 49
    %s162 = scalar_select %p161, %s160, 49
    %s163 = scalar_lea.vmem %s1, %s162
    %v164 = vld [vmem:[%s163] sm:$0x1]
    %165 = vst.msk [vmem:[#allocation2 + $0xc] sm:$0x1] %vm56, %v164
    %s166 = sadd.s32 %s46, 13
    %s167 = sld [smem:[#allocation4 + %s166]]
    %p168 = scmp.gt.s32.totalorder %s167, 0
    %s169 = scalar_select %p168, %s167, 0
    %p170 = scmp.lt.s32.totalorder %s169, 49
    %s171 = scalar_select %p170, %s169, 49
    %s172 = scalar_lea.vmem %s1, %s171
    %v173 = vld [vmem:[%s172] sm:$0x1]
    %174 = vst.msk [vmem:[#allocation2 + $0xd] sm:$0x1] %vm56, %v173
    %s175 = sadd.s32 %s46, 14
    %s176 = sld [smem:[#allocation4 + %s175]]
    %p177 = scmp.gt.s32.totalorder %s176, 0
    %s178 = scalar_select %p177, %s176, 0
    %p179 = scmp.lt.s32.totalorder %s178, 49
    %s180 = scalar_select %p179, %s178, 49
    %s181 = scalar_lea.vmem %s1, %s180
    %v182 = vld [vmem:[%s181] sm:$0x1]
    %183 = vst.msk [vmem:[#allocation2 + $0xe] sm:$0x1] %vm56, %v182
    %s184 = sadd.s32 %s46, 15
    %s185 = sld [smem:[#allocation4 + %s184]]
    %p186 = scmp.gt.s32.totalorder %s185, 0
    %s187 = scalar_select %p186, %s185, 0
    %p188 = scmp.lt.s32.totalorder %s187, 49
    %s189 = scalar_select %p188, %s187, 49
    %s190 = scalar_lea.vmem %s1, %s189
    %v191 = vld [vmem:[%s190] sm:$0x1]
    %192 = vst.msk [vmem:[#allocation2 + $0xf] sm:$0x1] %vm56, %v191
    %s193 = sadd.s32 %s46, 16
    %s194 = sld [smem:[#allocation4 + %s193]]
    %p195 = scmp.gt.s32.totalorder %s194, 0
    %s196 = scalar_select %p195, %s194, 0
    %p197 = scmp.lt.s32.totalorder %s196, 49
    %s198 = scalar_select %p197, %s196, 49
    %s199 = scalar_lea.vmem %s1, %s198
    %v200 = vld [vmem:[%s199] sm:$0x1]
    %201 = vst.msk [vmem:[#allocation2 + $0x10] sm:$0x1] %vm56, %v200
    %s202 = sadd.s32 %s46, 17
    %s203 = sld [smem:[#allocation4 + %s202]]
    %p204 = scmp.gt.s32.totalorder %s203, 0
    %s205 = scalar_select %p204, %s203, 0
    %p206 = scmp.lt.s32.totalorder %s205, 49
    %s207 = scalar_select %p206, %s205, 49
    %s208 = scalar_lea.vmem %s1, %s207
    %v209 = vld [vmem:[%s208] sm:$0x1]
    %210 = vst.msk [vmem:[#allocation2 + $0x11] sm:$0x1] %vm56, %v209
    %s211 = sadd.s32 %s46, 18
    %s212 = sld [smem:[#allocation4 + %s211]]
    %p213 = scmp.gt.s32.totalorder %s212, 0
    %s214 = scalar_select %p213, %s212, 0
    %p215 = scmp.lt.s32.totalorder %s214, 49
    %s216 = scalar_select %p215, %s214, 49
    %s217 = scalar_lea.vmem %s1, %s216
    %v218 = vld [vmem:[%s217] sm:$0x1]
    %219 = vst.msk [vmem:[#allocation2 + $0x12] sm:$0x1] %vm56, %v218
    %s220 = sadd.s32 %s46, 19
    %s221 = sld [smem:[#allocation4 + %s220]]
    %p222 = scmp.gt.s32.totalorder %s221, 0
    %s223 = scalar_select %p222, %s221, 0
    %p224 = scmp.lt.s32.totalorder %s223, 49
    %s225 = scalar_select %p224, %s223, 49
    %s226 = scalar_lea.vmem %s1, %s225
    %v227 = vld [vmem:[%s226] sm:$0x1]
    %228 = vst.msk [vmem:[#allocation2 + $0x13] sm:$0x1] %vm56, %v227
    %s229 = sadd.s32 %s46, 20
    %s230 = sld [smem:[#allocation4 + %s229]]
    %p231 = scmp.gt.s32.totalorder %s230, 0
    %s232 = scalar_select %p231, %s230, 0
    %p233 = scmp.lt.s32.totalorder %s232, 49
    %s234 = scalar_select %p233, %s232, 49
    %s235 = scalar_lea.vmem %s1, %s234
    %v236 = vld [vmem:[%s235] sm:$0x1]
    %237 = vst.msk [vmem:[#allocation2 + $0x14] sm:$0x1] %vm56, %v236
    %s238 = sadd.s32 %s46, 21
    %s239 = sld [smem:[#allocation4 + %s238]]
    %p240 = scmp.gt.s32.totalorder %s239, 0
    %s241 = scalar_select %p240, %s239, 0
    %p242 = scmp.lt.s32.totalorder %s241, 49
    %s243 = scalar_select %p242, %s241, 49
    %s244 = scalar_lea.vmem %s1, %s243
    %v245 = vld [vmem:[%s244] sm:$0x1]
    %246 = vst.msk [vmem:[#allocation2 + $0x15] sm:$0x1] %vm56, %v245
    %s247 = sadd.s32 %s46, 22
    %s248 = sld [smem:[#allocation4 + %s247]]
    %p249 = scmp.gt.s32.totalorder %s248, 0
    %s250 = scalar_select %p249, %s248, 0
    %p251 = scmp.lt.s32.totalorder %s250, 49
    %s252 = scalar_select %p251, %s250, 49
    %s253 = scalar_lea.vmem %s1, %s252
    %v254 = vld [vmem:[%s253] sm:$0x1]
    %255 = vst.msk [vmem:[#allocation2 + $0x16] sm:$0x1] %vm56, %v254
    %s256 = sadd.s32 %s46, 23
    %s257 = sld [smem:[#allocation4 + %s256]]
    %p258 = scmp.gt.s32.totalorder %s257, 0
    %s259 = scalar_select %p258, %s257, 0
    %p260 = scmp.lt.s32.totalorder %s259, 49
    %s261 = scalar_select %p260, %s259, 49
    %s262 = scalar_lea.vmem %s1, %s261
    %v263 = vld [vmem:[%s262] sm:$0x1]
    %264 = vst.msk [vmem:[#allocation2 + $0x17] sm:$0x1] %vm56, %v263
    %s265 = sadd.s32 %s46, 24
    %s266 = sld [smem:[#allocation4 + %s265]]
    %p267 = scmp.gt.s32.totalorder %s266, 0
    %s268 = scalar_select %p267, %s266, 0
    %p269 = scmp.lt.s32.totalorder %s268, 49
    %s270 = scalar_select %p269, %s268, 49
    %s271 = scalar_lea.vmem %s1, %s270
    %v272 = vld [vmem:[%s271] sm:$0x1]
    %273 = vst.msk [vmem:[#allocation2 + $0x18] sm:$0x1] %vm56, %v272
    %s274 = sadd.s32 %s46, 25
    %s275 = sld [smem:[#allocation4 + %s274]]
    %p276 = scmp.gt.s32.totalorder %s275, 0
    %s277 = scalar_select %p276, %s275, 0
    %p278 = scmp.lt.s32.totalorder %s277, 49
    %s279 = scalar_select %p278, %s277, 49
    %s280 = scalar_lea.vmem %s1, %s279
    %v281 = vld [vmem:[%s280] sm:$0x1]
    %282 = vst.msk [vmem:[#allocation2 + $0x19] sm:$0x1] %vm56, %v281
    %s283 = sadd.s32 %s46, 26
    %s284 = sld [smem:[#allocation4 + %s283]]
    %p285 = scmp.gt.s32.totalorder %s284, 0
    %s286 = scalar_select %p285, %s284, 0
    %p287 = scmp.lt.s32.totalorder %s286, 49
    %s288 = scalar_select %p287, %s286, 49
    %s289 = scalar_lea.vmem %s1, %s288
    %v290 = vld [vmem:[%s289] sm:$0x1]
    %291 = vst.msk [vmem:[#allocation2 + $0x1a] sm:$0x1] %vm56, %v290
    %s292 = sadd.s32 %s46, 27
    %s293 = sld [smem:[#allocation4 + %s292]]
    %p294 = scmp.gt.s32.totalorder %s293, 0
    %s295 = scalar_select %p294, %s293, 0
    %p296 = scmp.lt.s32.totalorder %s295, 49
    %s297 = scalar_select %p296, %s295, 49
    %s298 = scalar_lea.vmem %s1, %s297
    %v299 = vld [vmem:[%s298] sm:$0x1]
    %300 = vst.msk [vmem:[#allocation2 + $0x1b] sm:$0x1] %vm56, %v299
    %s301 = sadd.s32 %s46, 28
    %s302 = sld [smem:[#allocation4 + %s301]]
    %p303 = scmp.gt.s32.totalorder %s302, 0
    %s304 = scalar_select %p303, %s302, 0
    %p305 = scmp.lt.s32.totalorder %s304, 49
    %s306 = scalar_select %p305, %s304, 49
    %s307 = scalar_lea.vmem %s1, %s306
    %v308 = vld [vmem:[%s307] sm:$0x1]
    %309 = vst.msk [vmem:[#allocation2 + $0x1c] sm:$0x1] %vm56, %v308
    %s310 = sadd.s32 %s46, 29
    %s311 = sld [smem:[#allocation4 + %s310]]
    %p312 = scmp.gt.s32.totalorder %s311, 0
    %s313 = scalar_select %p312, %s311, 0
    %p314 = scmp.lt.s32.totalorder %s313, 49
    %s315 = scalar_select %p314, %s313, 49
    %s316 = scalar_lea.vmem %s1, %s315
    %v317 = vld [vmem:[%s316] sm:$0x1]
    %318 = vst.msk [vmem:[#allocation2 + $0x1d] sm:$0x1] %vm56, %v317
    %s319 = sadd.s32 %s46, 30
    %s320 = sld [smem:[#allocation4 + %s319]]
    %p321 = scmp.gt.s32.totalorder %s320, 0
    %s322 = scalar_select %p321, %s320, 0
    %p323 = scmp.lt.s32.totalorder %s322, 49
    %s324 = scalar_select %p323, %s322, 49
    %s325 = scalar_lea.vmem %s1, %s324
    %v326 = vld [vmem:[%s325] sm:$0x1]
    %327 = vst.msk [vmem:[#allocation2 + $0x1e] sm:$0x1] %vm56, %v326
    %s328 = sadd.s32 %s46, 31
    %s329 = sld [smem:[#allocation4 + %s328]]
    %p330 = scmp.gt.s32.totalorder %s329, 0
    %s331 = scalar_select %p330, %s329, 0
    %p332 = scmp.lt.s32.totalorder %s331, 49
    %s333 = scalar_select %p332, %s331, 49
    %s334 = scalar_lea.vmem %s1, %s333
    %v335 = vld [vmem:[%s334] sm:$0x1]
    %336 = vst.msk [vmem:[#allocation2 + $0x1f] sm:$0x1] %vm56, %v335
    %s337 = sadd.s32 %s46, 32
    %s338 = sld [smem:[#allocation4 + %s337]]
    %p339 = scmp.gt.s32.totalorder %s338, 0
    %s340 = scalar_select %p339, %s338, 0
    %p341 = scmp.lt.s32.totalorder %s340, 49
    %s342 = scalar_select %p341, %s340, 49
    %s343 = scalar_lea.vmem %s1, %s342
    %v344 = vld [vmem:[%s343] sm:$0x1]
    %345 = vst.msk [vmem:[#allocation2 + $0x20] sm:$0x1] %vm56, %v344
    %s346 = sadd.s32 %s46, 33
    %s347 = sld [smem:[#allocation4 + %s346]]
    %p348 = scmp.gt.s32.totalorder %s347, 0
    %s349 = scalar_select %p348, %s347, 0
    %p350 = scmp.lt.s32.totalorder %s349, 49
    %s351 = scalar_select %p350, %s349, 49
    %s352 = scalar_lea.vmem %s1, %s351
    %v353 = vld [vmem:[%s352] sm:$0x1]
    %354 = vst.msk [vmem:[#allocation2 + $0x21] sm:$0x1] %vm56, %v353
    %s355 = sadd.s32 %s46, 34
    %s356 = sld [smem:[#allocation4 + %s355]]
    %p357 = scmp.gt.s32.totalorder %s356, 0
    %s358 = scalar_select %p357, %s356, 0
    %p359 = scmp.lt.s32.totalorder %s358, 49
    %s360 = scalar_select %p359, %s358, 49
    %s361 = scalar_lea.vmem %s1, %s360
    %v362 = vld [vmem:[%s361] sm:$0x1]
    %363 = vst.msk [vmem:[#allocation2 + $0x22] sm:$0x1] %vm56, %v362
    %s364 = sadd.s32 %s46, 35
    %s365 = sld [smem:[#allocation4 + %s364]]
    %p366 = scmp.gt.s32.totalorder %s365, 0
    %s367 = scalar_select %p366, %s365, 0
    %p368 = scmp.lt.s32.totalorder %s367, 49
    %s369 = scalar_select %p368, %s367, 49
    %s370 = scalar_lea.vmem %s1, %s369
    %v371 = vld [vmem:[%s370] sm:$0x1]
    %372 = vst.msk [vmem:[#allocation2 + $0x23] sm:$0x1] %vm56, %v371
    %s373 = sadd.s32 %s46, 36
    %s374 = sld [smem:[#allocation4 + %s373]]
    %p375 = scmp.gt.s32.totalorder %s374, 0
    %s376 = scalar_select %p375, %s374, 0
    %p377 = scmp.lt.s32.totalorder %s376, 49
    %s378 = scalar_select %p377, %s376, 49
    %s379 = scalar_lea.vmem %s1, %s378
    %v380 = vld [vmem:[%s379] sm:$0x1]
    %381 = vst.msk [vmem:[#allocation2 + $0x24] sm:$0x1] %vm56, %v380
    %s382 = sadd.s32 %s46, 37
    %s383 = sld [smem:[#allocation4 + %s382]]
    %p384 = scmp.gt.s32.totalorder %s383, 0
    %s385 = scalar_select %p384, %s383, 0
    %p386 = scmp.lt.s32.totalorder %s385, 49
    %s387 = scalar_select %p386, %s385, 49
    %s388 = scalar_lea.vmem %s1, %s387
    %v389 = vld [vmem:[%s388] sm:$0x1]
    %390 = vst.msk [vmem:[#allocation2 + $0x25] sm:$0x1] %vm56, %v389
    %s391 = sadd.s32 %s46, 38
    %s392 = sld [smem:[#allocation4 + %s391]]
    %p393 = scmp.gt.s32.totalorder %s392, 0
    %s394 = scalar_select %p393, %s392, 0
    %p395 = scmp.lt.s32.totalorder %s394, 49
    %s396 = scalar_select %p395, %s394, 49
    %s397 = scalar_lea.vmem %s1, %s396
    %v398 = vld [vmem:[%s397] sm:$0x1]
    %399 = vst.msk [vmem:[#allocation2 + $0x26] sm:$0x1] %vm56, %v398
    %s400 = sadd.s32 %s46, 39
    %s401 = sld [smem:[#allocation4 + %s400]]
    %p402 = scmp.gt.s32.totalorder %s401, 0
    %s403 = scalar_select %p402, %s401, 0
    %p404 = scmp.lt.s32.totalorder %s403, 49
    %s405 = scalar_select %p404, %s403, 49
    %s406 = scalar_lea.vmem %s1, %s405
    %v407 = vld [vmem:[%s406] sm:$0x1]
    %408 = vst.msk [vmem:[#allocation2 + $0x27] sm:$0x1] %vm56, %v407
    %s409 = sadd.s32 %s46, 40
    %s410 = sld [smem:[#allocation4 + %s409]]
    %p411 = scmp.gt.s32.totalorder %s410, 0
    %s412 = scalar_select %p411, %s410, 0
    %p413 = scmp.lt.s32.totalorder %s412, 49
    %s414 = scalar_select %p413, %s412, 49
    %s415 = scalar_lea.vmem %s1, %s414
    %v416 = vld [vmem:[%s415] sm:$0x1]
    %417 = vst.msk [vmem:[#allocation2 + $0x28] sm:$0x1] %vm56, %v416
    %s418 = sadd.s32 %s46, 41
    %s419 = sld [smem:[#allocation4 + %s418]]
    %p420 = scmp.gt.s32.totalorder %s419, 0
    %s421 = scalar_select %p420, %s419, 0
    %p422 = scmp.lt.s32.totalorder %s421, 49
    %s423 = scalar_select %p422, %s421, 49
    %s424 = scalar_lea.vmem %s1, %s423
    %v425 = vld [vmem:[%s424] sm:$0x1]
    %426 = vst.msk [vmem:[#allocation2 + $0x29] sm:$0x1] %vm56, %v425
    %s427 = sadd.s32 %s46, 42
    %s428 = sld [smem:[#allocation4 + %s427]]
    %p429 = scmp.gt.s32.totalorder %s428, 0
    %s430 = scalar_select %p429, %s428, 0
    %p431 = scmp.lt.s32.totalorder %s430, 49
    %s432 = scalar_select %p431, %s430, 49
    %s433 = scalar_lea.vmem %s1, %s432
    %v434 = vld [vmem:[%s433] sm:$0x1]
    %435 = vst.msk [vmem:[#allocation2 + $0x2a] sm:$0x1] %vm56, %v434
    %s436 = sadd.s32 %s46, 43
    %s437 = sld [smem:[#allocation4 + %s436]]
    %p438 = scmp.gt.s32.totalorder %s437, 0
    %s439 = scalar_select %p438, %s437, 0
    %p440 = scmp.lt.s32.totalorder %s439, 49
    %s441 = scalar_select %p440, %s439, 49
    %s442 = scalar_lea.vmem %s1, %s441
    %v443 = vld [vmem:[%s442] sm:$0x1]
    %444 = vst.msk [vmem:[#allocation2 + $0x2b] sm:$0x1] %vm56, %v443
    %s445 = sadd.s32 %s46, 44
    %s446 = sld [smem:[#allocation4 + %s445]]
    %p447 = scmp.gt.s32.totalorder %s446, 0
    %s448 = scalar_select %p447, %s446, 0
    %p449 = scmp.lt.s32.totalorder %s448, 49
    %s450 = scalar_select %p449, %s448, 49
    %s451 = scalar_lea.vmem %s1, %s450
    %v452 = vld [vmem:[%s451] sm:$0x1]
    %453 = vst.msk [vmem:[#allocation2 + $0x2c] sm:$0x1] %vm56, %v452
    %s454 = sadd.s32 %s46, 45
    %s455 = sld [smem:[#allocation4 + %s454]]
    %p456 = scmp.gt.s32.totalorder %s455, 0
    %s457 = scalar_select %p456, %s455, 0
    %p458 = scmp.lt.s32.totalorder %s457, 49
    %s459 = scalar_select %p458, %s457, 49
    %s460 = scalar_lea.vmem %s1, %s459
    %v461 = vld [vmem:[%s460] sm:$0x1]
    %462 = vst.msk [vmem:[#allocation2 + $0x2d] sm:$0x1] %vm56, %v461
    %s463 = sadd.s32 %s46, 46
    %s464 = sld [smem:[#allocation4 + %s463]]
    %p465 = scmp.gt.s32.totalorder %s464, 0
    %s466 = scalar_select %p465, %s464, 0
    %p467 = scmp.lt.s32.totalorder %s466, 49
    %s468 = scalar_select %p467, %s466, 49
    %s469 = scalar_lea.vmem %s1, %s468
    %v470 = vld [vmem:[%s469] sm:$0x1]
    %471 = vst.msk [vmem:[#allocation2 + $0x2e] sm:$0x1] %vm56, %v470
    %s472 = sadd.s32 %s46, 47
    %s473 = sld [smem:[#allocation4 + %s472]]
    %p474 = scmp.gt.s32.totalorder %s473, 0
    %s475 = scalar_select %p474, %s473, 0
    %p476 = scmp.lt.s32.totalorder %s475, 49
    %s477 = scalar_select %p476, %s475, 49
    %s478 = scalar_lea.vmem %s1, %s477
    %v479 = vld [vmem:[%s478] sm:$0x1]
    %480 = vst.msk [vmem:[#allocation2 + $0x2f] sm:$0x1] %vm56, %v479
    %s481 = sadd.s32 %s46, 48
    %s482 = sld [smem:[#allocation4 + %s481]]
    %p483 = scmp.gt.s32.totalorder %s482, 0
    %s484 = scalar_select %p483, %s482, 0
    %p485 = scmp.lt.s32.totalorder %s484, 49
    %s486 = scalar_select %p485, %s484, 49
    %s487 = scalar_lea.vmem %s1, %s486
    %v488 = vld [vmem:[%s487] sm:$0x1]
    %489 = vst.msk [vmem:[#allocation2 + $0x30] sm:$0x1] %vm56, %v488
    %s490 = sadd.s32 %s46, 49
    %s491 = sld [smem:[#allocation4 + %s490]]
    %p492 = scmp.gt.s32.totalorder %s491, 0
    %s493 = scalar_select %p492, %s491, 0
    %p494 = scmp.lt.s32.totalorder %s493, 49
    %s495 = scalar_select %p494, %s493, 49
    %s496 = scalar_lea.vmem %s1, %s495
    %v497 = vld [vmem:[%s496] sm:$0x1]
    %498 = vst.msk [vmem:[#allocation2 + $0x31] sm:$0x1] %vm56, %v497
    %s499 = sadd.s32 %s46, 50
    %s500 = sld [smem:[#allocation4 + %s499]]
    %p501 = scmp.gt.s32.totalorder %s500, 0
    %s502 = scalar_select %p501, %s500, 0
    %p503 = scmp.lt.s32.totalorder %s502, 49
    %s504 = scalar_select %p503, %s502, 49
    %s505 = scalar_lea.vmem %s1, %s504
    %v506 = vld [vmem:[%s505] sm:$0x1]
    %507 = vst.msk [vmem:[#allocation2 + $0x32] sm:$0x1] %vm56, %v506
    %s508 = sadd.s32 %s46, 51
    %s509 = sld [smem:[#allocation4 + %s508]]
    %p510 = scmp.gt.s32.totalorder %s509, 0
    %s511 = scalar_select %p510, %s509, 0
    %p512 = scmp.lt.s32.totalorder %s511, 49
    %s513 = scalar_select %p512, %s511, 49
    %s514 = scalar_lea.vmem %s1, %s513
    %v515 = vld [vmem:[%s514] sm:$0x1]
    %516 = vst.msk [vmem:[#allocation2 + $0x33] sm:$0x1] %vm56, %v515
    %s517 = sadd.s32 %s46, 52
    %s518 = sld [smem:[#allocation4 + %s517]]
    %p519 = scmp.gt.s32.totalorder %s518, 0
    %s520 = scalar_select %p519, %s518, 0
    %p521 = scmp.lt.s32.totalorder %s520, 49
    %s522 = scalar_select %p521, %s520, 49
    %s523 = scalar_lea.vmem %s1, %s522
    %v524 = vld [vmem:[%s523] sm:$0x1]
    %525 = vst.msk [vmem:[#allocation2 + $0x34] sm:$0x1] %vm56, %v524
    %s526 = sadd.s32 %s46, 53
    %s527 = sld [smem:[#allocation4 + %s526]]
    %p528 = scmp.gt.s32.totalorder %s527, 0
    %s529 = scalar_select %p528, %s527, 0
    %p530 = scmp.lt.s32.totalorder %s529, 49
    %s531 = scalar_select %p530, %s529, 49
    %s532 = scalar_lea.vmem %s1, %s531
    %v533 = vld [vmem:[%s532] sm:$0x1]
    %534 = vst.msk [vmem:[#allocation2 + $0x35] sm:$0x1] %vm56, %v533
    %s535 = sadd.s32 %s46, 54
    %s536 = sld [smem:[#allocation4 + %s535]]
    %p537 = scmp.gt.s32.totalorder %s536, 0
    %s538 = scalar_select %p537, %s536, 0
    %p539 = scmp.lt.s32.totalorder %s538, 49
    %s540 = scalar_select %p539, %s538, 49
    %s541 = scalar_lea.vmem %s1, %s540
    %v542 = vld [vmem:[%s541] sm:$0x1]
    %543 = vst.msk [vmem:[#allocation2 + $0x36] sm:$0x1] %vm56, %v542
    %s544 = sadd.s32 %s46, 55
    %s545 = sld [smem:[#allocation4 + %s544]]
    %p546 = scmp.gt.s32.totalorder %s545, 0
    %s547 = scalar_select %p546, %s545, 0
    %p548 = scmp.lt.s32.totalorder %s547, 49
    %s549 = scalar_select %p548, %s547, 49
    %s550 = scalar_lea.vmem %s1, %s549
    %v551 = vld [vmem:[%s550] sm:$0x1]
    %552 = vst.msk [vmem:[#allocation2 + $0x37] sm:$0x1] %vm56, %v551
    %s553 = sadd.s32 %s46, 56
    %s554 = sld [smem:[#allocation4 + %s553]]
    %p555 = scmp.gt.s32.totalorder %s554, 0
    %s556 = scalar_select %p555, %s554, 0
    %p557 = scmp.lt.s32.totalorder %s556, 49
    %s558 = scalar_select %p557, %s556, 49
    %s559 = scalar_lea.vmem %s1, %s558
    %v560 = vld [vmem:[%s559] sm:$0x1]
    %561 = vst.msk [vmem:[#allocation2 + $0x38] sm:$0x1] %vm56, %v560
    %s562 = sadd.s32 %s46, 57
    %s563 = sld [smem:[#allocation4 + %s562]]
    %p564 = scmp.gt.s32.totalorder %s563, 0
    %s565 = scalar_select %p564, %s563, 0
    %p566 = scmp.lt.s32.totalorder %s565, 49
    %s567 = scalar_select %p566, %s565, 49
    %s568 = scalar_lea.vmem %s1, %s567
    %v569 = vld [vmem:[%s568] sm:$0x1]
    %570 = vst.msk [vmem:[#allocation2 + $0x39] sm:$0x1] %vm56, %v569
    %s571 = sadd.s32 %s46, 58
    %s572 = sld [smem:[#allocation4 + %s571]]
    %p573 = scmp.gt.s32.totalorder %s572, 0
    %s574 = scalar_select %p573, %s572, 0
    %p575 = scmp.lt.s32.totalorder %s574, 49
    %s576 = scalar_select %p575, %s574, 49
    %s577 = scalar_lea.vmem %s1, %s576
    %v578 = vld [vmem:[%s577] sm:$0x1]
    %579 = vst.msk [vmem:[#allocation2 + $0x3a] sm:$0x1] %vm56, %v578
    %s580 = sadd.s32 %s46, 59
    %s581 = sld [smem:[#allocation4 + %s580]]
    %p582 = scmp.gt.s32.totalorder %s581, 0
    %s583 = scalar_select %p582, %s581, 0
    %p584 = scmp.lt.s32.totalorder %s583, 49
    %s585 = scalar_select %p584, %s583, 49
    %s586 = scalar_lea.vmem %s1, %s585
    %v587 = vld [vmem:[%s586] sm:$0x1]
    %588 = vst.msk [vmem:[#allocation2 + $0x3b] sm:$0x1] %vm56, %v587
    %s589 = sadd.s32 %s46, 60
    %s590 = sld [smem:[#allocation4 + %s589]]
    %p591 = scmp.gt.s32.totalorder %s590, 0
    %s592 = scalar_select %p591, %s590, 0
    %p593 = scmp.lt.s32.totalorder %s592, 49
    %s594 = scalar_select %p593, %s592, 49
    %s595 = scalar_lea.vmem %s1, %s594
    %v596 = vld [vmem:[%s595] sm:$0x1]
    %597 = vst.msk [vmem:[#allocation2 + $0x3c] sm:$0x1] %vm56, %v596
    %s598 = sadd.s32 %s46, 61
    %s599 = sld [smem:[#allocation4 + %s598]]
    %p600 = scmp.gt.s32.totalorder %s599, 0
    %s601 = scalar_select %p600, %s599, 0
    %p602 = scmp.lt.s32.totalorder %s601, 49
    %s603 = scalar_select %p602, %s601, 49
    %s604 = scalar_lea.vmem %s1, %s603
    %v605 = vld [vmem:[%s604] sm:$0x1]
    %606 = vst.msk [vmem:[#allocation2 + $0x3d] sm:$0x1] %vm56, %v605
    %s607 = sadd.s32 %s46, 62
    %s608 = sld [smem:[#allocation4 + %s607]]
    %p609 = scmp.gt.s32.totalorder %s608, 0
    %s610 = scalar_select %p609, %s608, 0
    %p611 = scmp.lt.s32.totalorder %s610, 49
    %s612 = scalar_select %p611, %s610, 49
    %s613 = scalar_lea.vmem %s1, %s612
    %v614 = vld [vmem:[%s613] sm:$0x1]
    %615 = vst.msk [vmem:[#allocation2 + $0x3e] sm:$0x1] %vm56, %v614
    %s616 = sadd.s32 %s46, 63
    %s617 = sld [smem:[#allocation4 + %s616]]
    %p618 = scmp.gt.s32.totalorder %s617, 0
    %s619 = scalar_select %p618, %s617, 0
    %p620 = scmp.lt.s32.totalorder %s619, 49
    %s621 = scalar_select %p620, %s619, 49
    %s622 = scalar_lea.vmem %s1, %s621
    %v623 = vld [vmem:[%s622] sm:$0x1]
    %624 = vst.msk [vmem:[#allocation2 + $0x3f] sm:$0x1] %vm56, %v623
    %v625 = vld [vmem:[#allocation2] sm:$0xff]
    %v626 = vld [vmem:[#allocation2 + $0x8] sm:$0xff]
    %v627 = vld [vmem:[#allocation2 + $0x10] sm:$0xff]
    %v628 = vld [vmem:[#allocation2 + $0x18] sm:$0xff]
    %v629 = vld [vmem:[#allocation2 + $0x20] sm:$0xff]
    %v630 = vld [vmem:[#allocation2 + $0x28] sm:$0xff]
    %v631 = vld [vmem:[#allocation2 + $0x30] sm:$0xff]
    %v632 = vld [vmem:[#allocation2 + $0x38] sm:$0xff]
    %v633 = vld [vmem:[#allocation2 + $0x1] sm:$0xff]
    %v634 = vld [vmem:[#allocation2 + $0x9] sm:$0xff]
    %v635 = vld [vmem:[#allocation2 + $0x11] sm:$0xff]
    %v636 = vld [vmem:[#allocation2 + $0x19] sm:$0xff]
    %v637 = vld [vmem:[#allocation2 + $0x21] sm:$0xff]
    %v638 = vld [vmem:[#allocation2 + $0x29] sm:$0xff]
    %v639 = vld [vmem:[#allocation2 + $0x31] sm:$0xff]
    %v640 = vld [vmem:[#allocation2 + $0x39] sm:$0xff]
    %v641 = vld [vmem:[#allocation2 + $0x2] sm:$0xff]
    %v642 = vld [vmem:[#allocation2 + $0xa] sm:$0xff]
    %v643 = vld [vmem:[#allocation2 + $0x12] sm:$0xff]
    %v644 = vld [vmem:[#allocation2 + $0x1a] sm:$0xff]
    %v645 = vld [vmem:[#allocation2 + $0x22] sm:$0xff]
    %v646 = vld [vmem:[#allocation2 + $0x2a] sm:$0xff]
    %v647 = vld [vmem:[#allocation2 + $0x32] sm:$0xff]
    %v648 = vld [vmem:[#allocation2 + $0x3a] sm:$0xff]
    %v649 = vld [vmem:[#allocation2 + $0x3] sm:$0xff]
    %v650 = vld [vmem:[#allocation2 + $0xb] sm:$0xff]
    %v651 = vld [vmem:[#allocation2 + $0x13] sm:$0xff]
    %v652 = vld [vmem:[#allocation2 + $0x1b] sm:$0xff]
    %v653 = vld [vmem:[#allocation2 + $0x23] sm:$0xff]
    %v654 = vld [vmem:[#allocation2 + $0x2b] sm:$0xff]
    %v655 = vld [vmem:[#allocation2 + $0x33] sm:$0xff]
    %v656 = vld [vmem:[#allocation2 + $0x3b] sm:$0xff]
    %665 = vrot.lane.b32.xlu0 %v633, 32
    %v666 = vpop.permute.xlu0 %665
    %667 = vrot.lane.b32.xlu0 %v634, 32
    %v668 = vpop.permute.xlu0 %667
    %669 = vrot.lane.b32.xlu0 %v635, 32
    %v670 = vpop.permute.xlu0 %669
    %671 = vrot.lane.b32.xlu0 %v636, 32
    %v672 = vpop.permute.xlu0 %671
    %673 = vrot.lane.b32.xlu0 %v637, 32
    %v674 = vpop.permute.xlu0 %673
    %675 = vrot.lane.b32.xlu0 %v638, 32
    %v676 = vpop.permute.xlu0 %675
    %677 = vrot.lane.b32.xlu0 %v639, 32
    %v678 = vpop.permute.xlu0 %677
    %679 = vrot.lane.b32.xlu0 %v640, 32
    %v680 = vpop.permute.xlu0 %679
    %697 = vrot.lane.b32.xlu0 %v641, 64
    %v698 = vpop.permute.xlu0 %697
    %699 = vrot.lane.b32.xlu0 %v642, 64
    %v700 = vpop.permute.xlu0 %699
    %701 = vrot.lane.b32.xlu0 %v643, 64
    %v702 = vpop.permute.xlu0 %701
    %703 = vrot.lane.b32.xlu0 %v644, 64
    %v704 = vpop.permute.xlu0 %703
    %705 = vrot.lane.b32.xlu0 %v645, 64
    %v706 = vpop.permute.xlu0 %705
    %707 = vrot.lane.b32.xlu0 %v646, 64
    %v708 = vpop.permute.xlu0 %707
    %709 = vrot.lane.b32.xlu0 %v647, 64
    %v710 = vpop.permute.xlu0 %709
    %711 = vrot.lane.b32.xlu0 %v648, 64
    %v712 = vpop.permute.xlu0 %711
    %729 = vrot.lane.b32.xlu0 %v649, 96
    %v730 = vpop.permute.xlu0 %729
    %731 = vrot.lane.b32.xlu0 %v650, 96
    %v732 = vpop.permute.xlu0 %731
    %733 = vrot.lane.b32.xlu0 %v651, 96
    %v734 = vpop.permute.xlu0 %733
    %735 = vrot.lane.b32.xlu0 %v652, 96
    %v736 = vpop.permute.xlu0 %735
    %737 = vrot.lane.b32.xlu0 %v653, 96
    %v738 = vpop.permute.xlu0 %737
    %739 = vrot.lane.b32.xlu0 %v654, 96
    %v740 = vpop.permute.xlu0 %739
    %741 = vrot.lane.b32.xlu0 %v655, 96
    %v742 = vpop.permute.xlu0 %741
    %743 = vrot.lane.b32.xlu0 %v656, 96
    %v744 = vpop.permute.xlu0 %743
    %vm753 = vcmask 261120
    %v754 = vsel %vm753, %v625, %v666
    %v755 = vsel %vm753, %v626, %v668
    %v756 = vsel %vm753, %v627, %v670
    %v757 = vsel %vm753, %v628, %v672
    %v758 = vsel %vm753, %v629, %v674
    %v759 = vsel %vm753, %v630, %v676
    %v760 = vsel %vm753, %v631, %v678
    %v761 = vsel %vm753, %v632, %v680
    %vm762 = vcmask 523264
    %v763 = vsel %vm762, %v754, %v698
    %v764 = vsel %vm762, %v755, %v700
    %v765 = vsel %vm762, %v756, %v702
    %v766 = vsel %vm762, %v757, %v704
    %v767 = vsel %vm762, %v758, %v706
    %v768 = vsel %vm762, %v759, %v708
    %v769 = vsel %vm762, %v760, %v710
    %v770 = vsel %vm762, %v761, %v712
    %vm771 = vcmask 785408
    %v772 = vsel %vm771, %v763, %v730
    %v773 = vsel %vm771, %v764, %v732
    %v774 = vsel %vm771, %v765, %v734
    %v775 = vsel %vm771, %v766, %v736
    %v776 = vsel %vm771, %v767, %v738
    %v777 = vsel %vm771, %v768, %v740
    %v778 = vsel %vm771, %v769, %v742
    %v779 = vsel %vm771, %v770, %v744
    %v780 = vpack.c.bf16 %v773, %v772
    %v781 = vpack.c.bf16 %v775, %v774
    %v782 = vpack.c.bf16 %v777, %v776
    %v783 = vpack.c.bf16 %v779, %v778
    %v784 = vld [vmem:[%s2] sm:$0xf]
    %v785 = vld [vmem:[%s2 + $0x4] sm:$0xf]
    %v786 = vld [vmem:[%s2 + $0x8] sm:$0xf]
    %v787 = vld [vmem:[%s2 + $0xc] sm:$0xf]
    %v788 = vld [vmem:[%s2 + $0x10] sm:$0xf]
    %v789 = vld [vmem:[%s2 + $0x14] sm:$0xf]
    %v790 = vld [vmem:[%s2 + $0x18] sm:$0xf]
    %v791 = vld [vmem:[%s2 + $0x1c] sm:$0xf]
    %v792 = vld [vmem:[%s2 + $0x20] sm:$0xf]
    %v793 = vld [vmem:[%s2 + $0x24] sm:$0xf]
    %v794 = vld [vmem:[%s2 + $0x28] sm:$0xf]
    %v795 = vld [vmem:[%s2 + $0x2c] sm:$0xf]
    %v796 = vld [vmem:[%s2 + $0x30] sm:$0xf]
    %v797 = vld [vmem:[%s2 + $0x34] sm:$0xf]
    %v798 = vld [vmem:[%s2 + $0x38] sm:$0xf]
    %v799 = vld [vmem:[%s2 + $0x3c] sm:$0xf]
    %v800 = vld [vmem:[%s3] sm:$0x1]
    %v802 = vlaneseq
    %v803 = vshrl.u32 %v802, 7
    %v804 = vsub.s32 0, %v803
    %v805 = vrot.slane %v800, %v804
    %v823 = vunpack.c.l.b16 %v784
    %v824 = vunpack.c.l.b16 %v785
    %v825 = vunpack.c.l.b16 %v786
    %v826 = vunpack.c.l.b16 %v787
    %v827 = vunpack.c.l.b16 %v788
    %v828 = vunpack.c.l.b16 %v789
    %v829 = vunpack.c.l.b16 %v790
    %v830 = vunpack.c.l.b16 %v791
    %v831 = vunpack.c.l.b16 %v792
    %v832 = vunpack.c.l.b16 %v793
    %v833 = vunpack.c.l.b16 %v794
    %v834 = vunpack.c.l.b16 %v795
    %v835 = vunpack.c.l.b16 %v796
    %v836 = vunpack.c.l.b16 %v797
    %v837 = vunpack.c.l.b16 %v798
    %v838 = vunpack.c.l.b16 %v799
    %v839 = vpack.c.b16 %v824, %v823
    %v840 = vpack.c.b16 %v826, %v825
    %v841 = vpack.c.b16 %v828, %v827
    %v842 = vpack.c.b16 %v830, %v829
    %v843 = vpack.c.b16 %v832, %v831
    %v844 = vpack.c.b16 %v834, %v833
    %v845 = vpack.c.b16 %v836, %v835
    %v846 = vpack.c.b16 %v838, %v837
    %855 = vmatprep.subr.bf16.mxu0 0
    %856 = vmatpush1.bf16.msra.mxu0 %v846
    %857 = vmatprep.subr.bf16.mxu0 0
    %858 = vmatpush1.bf16.msra.mxu0 %v845
    %859 = vmatprep.subr.bf16.mxu0 0
    %860 = vmatpush1.bf16.msra.mxu0 %v844
    %861 = vmatprep.subr.bf16.mxu0 0
    %862 = vmatpush1.bf16.msra.mxu0 %v843
    %863 = vmatprep.subr.bf16.mxu0 0
    %864 = vmatpush1.bf16.msra.mxu0 %v842
    %865 = vmatprep.subr.bf16.mxu0 0
    %866 = vmatpush1.bf16.msra.mxu0 %v841
    %867 = vmatprep.subr.bf16.mxu0 0
    %868 = vmatpush1.bf16.msra.mxu0 %v840
    %869 = vmatprep.subr.bf16.mxu0 0
    %870 = vmatpush1.bf16.msra.mxu0 %v839
    %871 = vmatprep.subr.bf16.mxu0 0
    %872 = vmatpush2.bf16.msra.mxu0 0
    %873 = vmatprep.subr.bf16.mxu0 0
    %874 = vmatpush2.bf16.msra.mxu0 0
    %875 = vmatprep.subr.bf16.mxu0 0
    %876 = vmatpush2.bf16.msra.mxu0 0
    %877 = vmatprep.subr.bf16.mxu0 0
    %878 = vmatpush2.bf16.msra.mxu0 0
    %879 = vmatprep.subr.bf16.mxu0 0
    %880 = vmatpush2.bf16.msra.mxu0 0
    %881 = vmatprep.subr.bf16.mxu0 0
    %882 = vmatpush2.bf16.msra.mxu0 0
    %883 = vmatprep.subr.bf16.mxu0 0
    %884 = vmatpush2.bf16.msra.mxu0 0
    %885 = vmatprep.subr.bf16.mxu0 0
    %886 = vmatpush2.bf16.msra.mxu0 0
    %887 = vmatprep.mubr.bf16.mxu0 0
    %888 = vmatmul.mubr.bf16.gmra.mxu0 %v780
    %v889 = vpop.f32.mrf.mxu0
    %v890 = vadd.f32 %v805, %v889
    %v891 = vpop.f32.mrf.mxu0
    %v892 = vpop.f32.mrf.mxu0
    %v893 = vadd.f32 %v805, %v892
    %v894 = vpop.f32.mrf.mxu0
    %895 = vmatprep.mubr.bf16.mxu0 0
    %896 = vmatmul.mubr.bf16.gmra.mxu0 %v781
    %v897 = vpop.f32.mrf.mxu0
    %v898 = vadd.f32 %v805, %v897
    %v899 = vpop.f32.mrf.mxu0
    %v900 = vpop.f32.mrf.mxu0
    %v901 = vadd.f32 %v805, %v900
    %v902 = vpop.f32.mrf.mxu0
    %903 = vmatprep.mubr.bf16.mxu0 0
    %904 = vmatmul.mubr.bf16.gmra.mxu0 %v782
    %v905 = vpop.f32.mrf.mxu0
    %v906 = vadd.f32 %v805, %v905
    %v907 = vpop.f32.mrf.mxu0
    %v908 = vpop.f32.mrf.mxu0
    %v909 = vadd.f32 %v805, %v908
    %v910 = vpop.f32.mrf.mxu0
    %911 = vmatprep.mubr.bf16.mxu0 0
    %912 = vmatmul.mubr.bf16.gmra.mxu0 %v783
    %v913 = vpop.f32.mrf.mxu0
    %v914 = vadd.f32 %v805, %v913
    %v915 = vpop.f32.mrf.mxu0
    %v916 = vpop.f32.mrf.mxu0
    %v917 = vadd.f32 %v805, %v916
    %v918 = vpop.f32.mrf.mxu0
    %919 = vdwg.mxu0
    %v920 = vmax.f32 %v890, 0.0
    %v921 = vmax.f32 %v893, 0.0
    %v922 = vmax.f32 %v898, 0.0
    %v923 = vmax.f32 %v901, 0.0
    %v924 = vmax.f32 %v906, 0.0
    %v925 = vmax.f32 %v909, 0.0
    %v926 = vmax.f32 %v914, 0.0
    %v927 = vmax.f32 %v917, 0.0
    %v928 = vld [vmem:[%s4] sm:$0xff]
    %v929 = vmul.f32 %v920, %v928
    %v930 = vmul.f32 %v921, %v928
    %v931 = vmul.f32 %v922, %v928
    %v932 = vmul.f32 %v923, %v928
    %v933 = vmul.f32 %v924, %v928
    %v934 = vmul.f32 %v925, %v928
    %v935 = vmul.f32 %v926, %v928
    %v936 = vmul.f32 %v927, %v928
    %v937 = vrot.slane %v929, 4
    %v938 = vmax.f32 %v929, %v937
    %v939 = vrot.slane %v938, 2
    %v940 = vmax.f32 %v938, %v939
    %v941 = vrot.slane %v940, 1
    %v942 = vmax.f32 %v940, %v941
    %v943 = vrot.slane %v930, 4
    %v944 = vmax.f32 %v930, %v943
    %v945 = vrot.slane %v944, 2
    %v946 = vmax.f32 %v944, %v945
    %v947 = vrot.slane %v946, 1
    %v948 = vmax.f32 %v946, %v947
    %v949 = vrot.slane %v931, 4
    %v950 = vmax.f32 %v931, %v949
    %v951 = vrot.slane %v950, 2
    %v952 = vmax.f32 %v950, %v951
    %v953 = vrot.slane %v952, 1
    %v954 = vmax.f32 %v952, %v953
    %v955 = vrot.slane %v932, 4
    %v956 = vmax.f32 %v932, %v955
    %v957 = vrot.slane %v956, 2
    %v958 = vmax.f32 %v956, %v957
    %v959 = vrot.slane %v958, 1
    %v960 = vmax.f32 %v958, %v959
    %v961 = vrot.slane %v933, 4
    %v962 = vmax.f32 %v933, %v961
    %v963 = vrot.slane %v962, 2
    %v964 = vmax.f32 %v962, %v963
    %v965 = vrot.slane %v964, 1
    %v966 = vmax.f32 %v964, %v965
    %v967 = vrot.slane %v934, 4
    %v968 = vmax.f32 %v934, %v967
    %v969 = vrot.slane %v968, 2
    %v970 = vmax.f32 %v968, %v969
    %v971 = vrot.slane %v970, 1
    %v972 = vmax.f32 %v970, %v971
    %v973 = vrot.slane %v935, 4
    %v974 = vmax.f32 %v935, %v973
    %v975 = vrot.slane %v974, 2
    %v976 = vmax.f32 %v974, %v975
    %v977 = vrot.slane %v976, 1
    %v978 = vmax.f32 %v976, %v977
    %v979 = vrot.slane %v936, 4
    %v980 = vmax.f32 %v936, %v979
    %v981 = vrot.slane %v980, 2
    %v982 = vmax.f32 %v980, %v981
    %v983 = vrot.slane %v982, 1
    %v984 = vmax.f32 %v982, %v983
    %v985 = vpack.c.bf16 %v942, %v942
    %v986 = vpack.c.bf16 %v948, %v948
    %v987 = vpack.c.bf16 %v954, %v954
    %v988 = vpack.c.bf16 %v960, %v960
    %v989 = vpack.c.bf16 %v966, %v966
    %v990 = vpack.c.bf16 %v972, %v972
    %v991 = vpack.c.bf16 %v978, %v978
    %v992 = vpack.c.bf16 %v984, %v984
    %v993 = vld [vmem:[#allocation5] sm:$0xf]
    %v994 = vld [vmem:[#allocation5 + $0x4] sm:$0xf]
    %v995 = vld [vmem:[#allocation5 + $0x8] sm:$0xf]
    %v996 = vld [vmem:[#allocation5 + $0xc] sm:$0xf]
    %v997 = vld [vmem:[#allocation5 + $0x10] sm:$0xf]
    %v998 = vld [vmem:[#allocation5 + $0x14] sm:$0xf]
    %v999 = vld [vmem:[#allocation5 + $0x18] sm:$0xf]
    %v1000 = vld [vmem:[#allocation5 + $0x1c] sm:$0xf]
    %v1001 = vld [vmem:[#allocation5 + $0x20] sm:$0xf]
    %v1002 = vld [vmem:[#allocation5 + $0x24] sm:$0xf]
    %v1003 = vld [vmem:[#allocation5 + $0x28] sm:$0xf]
    %v1004 = vld [vmem:[#allocation5 + $0x2c] sm:$0xf]
    %v1005 = vld [vmem:[#allocation5 + $0x30] sm:$0xf]
    %v1006 = vld [vmem:[#allocation5 + $0x34] sm:$0xf]
    %v1007 = vld [vmem:[#allocation5 + $0x38] sm:$0xf]
    %v1008 = vld [vmem:[#allocation5 + $0x3c] sm:$0xf]
    %v1009 = vld [vmem:[%s6] sm:$0x1]
    %v1011 = vlaneseq
    %v1012 = vshrl.u32 %v1011, 7
    %v1013 = vsub.s32 0, %v1012
    %v1014 = vrot.slane %v1009, %v1013
    %v1024 = vunpack.c.l.b16 %v985
    %v1025 = vunpack.c.l.b16 %v986
    %v1026 = vunpack.c.l.b16 %v987
    %v1027 = vunpack.c.l.b16 %v988
    %v1028 = vunpack.c.l.b16 %v989
    %v1029 = vunpack.c.l.b16 %v990
    %v1030 = vunpack.c.l.b16 %v991
    %v1031 = vunpack.c.l.b16 %v992
    %vm1032 = vcmask 1041409
    %v1033 = vsel %vm1032, %v1025, %v1024
    %vm1034 = vcmask 1042434
    %v1035 = vsel %vm1034, %v1026, %v1033
    %vm1036 = vcmask 1043459
    %v1037 = vsel %vm1036, %v1027, %v1035
    %vm1038 = vcmask 1044484
    %v1039 = vsel %vm1038, %v1028, %v1037
    %vm1040 = vcmask 1045509
    %v1041 = vsel %vm1040, %v1029, %v1039
    %vm1042 = vcmask 1046534
    %v1043 = vsel %vm1042, %v1030, %v1041
    %vm1044 = vcmask 1047559
    %v1045 = vsel %vm1044, %v1031, %v1043
    %v1046 = vpack.c.b16 %v1045, %v1045
    %v1064 = vunpack.c.l.b16 %v993
    %v1065 = vunpack.c.l.b16 %v994
    %v1066 = vunpack.c.l.b16 %v995
    %v1067 = vunpack.c.l.b16 %v996
    %v1068 = vunpack.c.l.b16 %v997
    %v1069 = vunpack.c.l.b16 %v998
    %v1070 = vunpack.c.l.b16 %v999
    %v1071 = vunpack.c.l.b16 %v1000
    %v1072 = vunpack.c.l.b16 %v1001
    %v1073 = vunpack.c.l.b16 %v1002
    %v1074 = vunpack.c.l.b16 %v1003
    %v1075 = vunpack.c.l.b16 %v1004
    %v1076 = vunpack.c.l.b16 %v1005
    %v1077 = vunpack.c.l.b16 %v1006
    %v1078 = vunpack.c.l.b16 %v1007
    %v1079 = vunpack.c.l.b16 %v1008
    %v1080 = vpack.c.b16 %v1065, %v1064
    %v1081 = vpack.c.b16 %v1067, %v1066
    %v1082 = vpack.c.b16 %v1069, %v1068
    %v1083 = vpack.c.b16 %v1071, %v1070
    %v1084 = vpack.c.b16 %v1073, %v1072
    %v1085 = vpack.c.b16 %v1075, %v1074
    %v1086 = vpack.c.b16 %v1077, %v1076
    %v1087 = vpack.c.b16 %v1079, %v1078
    %1096 = vmatprep.subr.bf16.mxu0 0
    %1097 = vmatpush1.bf16.msra.mxu0 %v1087
    %1098 = vmatprep.subr.bf16.mxu0 0
    %1099 = vmatpush1.bf16.msra.mxu0 %v1086
    %1100 = vmatprep.subr.bf16.mxu0 0
    %1101 = vmatpush1.bf16.msra.mxu0 %v1085
    %1102 = vmatprep.subr.bf16.mxu0 0
    %1103 = vmatpush1.bf16.msra.mxu0 %v1084
    %1104 = vmatprep.subr.bf16.mxu0 0
    %1105 = vmatpush1.bf16.msra.mxu0 %v1083
    %1106 = vmatprep.subr.bf16.mxu0 0
    %1107 = vmatpush1.bf16.msra.mxu0 %v1082
    %1108 = vmatprep.subr.bf16.mxu0 0
    %1109 = vmatpush1.bf16.msra.mxu0 %v1081
    %1110 = vmatprep.subr.bf16.mxu0 0
    %1111 = vmatpush1.bf16.msra.mxu0 %v1080
    %1112 = vmatprep.subr.bf16.mxu0 0
    %1113 = vmatpush2.bf16.msra.mxu0 0
    %1114 = vmatprep.subr.bf16.mxu0 0
    %1115 = vmatpush2.bf16.msra.mxu0 0
    %1116 = vmatprep.subr.bf16.mxu0 0
    %1117 = vmatpush2.bf16.msra.mxu0 0
    %1118 = vmatprep.subr.bf16.mxu0 0
    %1119 = vmatpush2.bf16.msra.mxu0 0
    %1120 = vmatprep.subr.bf16.mxu0 0
    %1121 = vmatpush2.bf16.msra.mxu0 0
    %1122 = vmatprep.subr.bf16.mxu0 0
    %1123 = vmatpush2.bf16.msra.mxu0 0
    %1124 = vmatprep.subr.bf16.mxu0 0
    %1125 = vmatpush2.bf16.msra.mxu0 0
    %1126 = vmatprep.subr.bf16.mxu0 0
    %1127 = vmatpush2.bf16.msra.mxu0 0
    %1128 = vmatprep.mubr.bf16.mxu0 0
    %1129 = vmatmul.mubr.bf16.gmra.mxu0 %v1046
    %v1130 = vpop.f32.mrf.mxu0
    %v1131 = vadd.f32 %v1014, %v1130
    %v1132 = vpop.f32.mrf.mxu0
    %v1133 = vpop.f32.mrf.mxu0
    %v1134 = vpop.f32.mrf.mxu0
    %1135 = vdwg.mxu0
    %1136 = vst [vmem:[#allocation8] sm:$0xff] %v1131
    // Predicated region
    $region30: #{tpu_custom_call.1} parent=1 // pred_check
      _
    $region31: #{tpu_custom_call.1} parent=1 // pred_check_branch
      %1138 = sbr.rel (0) target = $region33
    $region32: #{tpu_custom_call.1} parent=1 // pred_region
      %s1140 = ssub.s32 128, 128
      %1141 = vsyncadd [#allocation7], %s1140
      %s1143 = sshll.u32 [#allocation8], 4
      %s1144 = int_to_ptr.vmem [resolvable:$true] %s1143
      %1146 = dma.vmem_to_hbm [thread:$0]  %s1144, 128, %s7, [#allocation7]
    $region33: #{tpu_custom_call.1} parent=1 // pred_fallthru
      _
    // Predicated region
    $region34: #{tpu_custom_call.1} parent=1 // pred_check
      _
    $region35: #{tpu_custom_call.1} parent=1 // pred_check_branch
      %1148 = sbr.rel (0) target = $region37
    $region36: #{tpu_custom_call.1} parent=1 // pred_region
      %1149 = dma.done [#allocation7], 128
    $region37: #{tpu_custom_call.1} parent=1 // pred_fallthru
      _
    %1150 = vsyncpa [#allocation6], 1
    %1151 = vsyncpa [#allocation7], 1

</llo_original>
